<compile_context>
chip_gen: v6e
topology: v6e:2x2x1
jax: 0.10.0
libtpu: 0.0.40
codegen_flags: <defaults>
</compile_context>

<pallas_src>
import jax
import jax.numpy as jnp
from jax.experimental import pallas as pl
from jax.experimental.pallas import tpu as pltpu

K = 3          # 3x3 conv, stride 1, pad 1 ("same")
EPS = 1e-12    # F.normalize eps


# ---------------------------------------------------------------------------
# Wrapper: padding/flattening glue + one fused pallas_call
# ---------------------------------------------------------------------------
def extract_features(x, params):
    """x: (B, C, H, W) float32 NCHW. Returns (B, feature_dim), L2-normalized."""
    wc, bc, w1, b1, w2, b2 = (params[k] for k in ("wc", "bc", "w1", "b1", "w2", "b2"))
    B, C, H, W = x.shape
    Hp, Wp = H + 2, W + 2
    HW = H * W
    L = (H - 1) * Wp + W          # flattened-window span covering all valid outputs
    KKC = K * K * C               # fused contraction depth (27)
    Cb = wc.shape[0]              # conv output channels ("backbone_out") = 128
    Hd = w1.shape[1]              # projector hidden = 2 * feature_dim
    F = w2.shape[1]               # feature_dim

    # Zero "same" padding once, flatten spatial, ship the big stream as bf16.
    xpad = jnp.pad(x, ((0, 0), (0, 0), (1, 1), (1, 1)))
    xflat = xpad.reshape(B, C, Hp * Wp).astype(jnp.bfloat16)

    # MXU operands in bf16 (f32 accumulation inside the kernel).
    wc_bf = wc.astype(jnp.bfloat16)            # (Cb, KKC)
    w2_bf = w2.astype(jnp.bfloat16)            # (Hd, F)

    # Pool mask: lanes s with s % Wp >= W are padded-column garbage in the
    # flattened-window trick; fold the 1/HW average scale into the mask.
    col = jnp.arange(L, dtype=jnp.int32) % Wp
    maskscale = (jnp.where(col < W, 1.0, 0.0) / float(HW)).reshape(1, L)
    maskscale = maskscale.astype(jnp.float32)

    def fused_kernel(x_ref, wc_ref, bc_ref, ms_ref, w1_ref, b1_ref, w2_ref, b2_ref,
                     out_ref):
        # x_ref: (B, C, Hp*Wp) bf16     wc_ref: (Cb, KKC) bf16
        # bc_ref: (Cb, 1) f32           ms_ref: (1, L) f32
        # w1_ref: (Cb, Hd) f32          b1_ref: (1, Hd) f32
        # w2_ref: (Hd, F) bf16          b2_ref: (1, F) f32
        # out_ref: (B, F) f32
        ms = ms_ref[...]
        w1m = w1_ref[...]
        h_rows = []
        for b in range(B):                                  # B is tiny & static
            # f32 hop only for the robust unaligned 3-row sublane concat below;
            # the MXU operands stay bf16.  TODO(synk): at real sizes assemble the
            # slab from tile-aligned bf16 loads instead of 9 unaligned slices.
            xb = x_ref[b].astype(jnp.float32)               # (C, Hp*Wp)
            rows = [xb[:, kh * Wp + kw: kh * Wp + kw + L]
                    for kh in range(K) for kw in range(K)]
            slab = jnp.concatenate(rows, axis=0).astype(jnp.bfloat16)   # (KKC, L)
            # One MXU matmul, contraction K*K*C, f32 accumulation.
            conv = jnp.dot(wc_ref[...], slab,
                           preferred_element_type=jnp.float32)          # (Cb, L)
            act = jnp.maximum(conv + bc_ref[...], 0.0)                  # bias+ReLU
            # Masked global average pool (scale folded into mask): lane reduce.
            pooled = jnp.sum(act * ms, axis=1, keepdims=True)           # (Cb, 1)
            # Projector layer 1 as VPU broadcast-multiply + sublane reduce; this
            # also flips the (Cb,1) column into a (1,Hd) row (no transpose).
            h_rows.append(jnp.sum(w1m * pooled, axis=0, keepdims=True))  # (1, Hd)
        h = jnp.concatenate(h_rows, axis=0) if B > 1 else h_rows[0]      # (B, Hd)
        h = jnp.maximum(h + b1_ref[...], 0.0)
        # TODO(synk): nn.Dropout is identity in eval mode.
        f = jnp.dot(h.astype(jnp.bfloat16), w2_ref[...],
                    preferred_element_type=jnp.float32)                  # (B, F) MXU
        f = jnp.maximum(f + b2_ref[...], 0.0)
        # F.normalize(p=2, dim=1): clamp ||f|| at eps  <=>  clamp sum(f^2) at eps^2.
        sumsq = jnp.sum(f * f, axis=1, keepdims=True)                    # (B, 1)
        out_ref[...] = f * jax.lax.rsqrt(jnp.maximum(sumsq, EPS * EPS))  # lane-dense

    out = pl.pallas_call(
        fused_kernel,
        out_shape=jax.ShapeDtypeStruct((B, F), jnp.float32),
        grid=(1,),
        in_specs=[
            pl.BlockSpec((B, C, Hp * Wp), lambda i: (0, 0, 0)),   # padded image slab
            pl.BlockSpec((Cb, KKC), lambda i: (0, 0)),            # conv weight (bf16)
            pl.BlockSpec((Cb, 1), lambda i: (0, 0)),              # conv bias
            pl.BlockSpec((1, L), lambda i: (0, 0)),               # pool mask * 1/HW
            pl.BlockSpec((Cb, Hd), lambda i: (0, 0)),             # projector W1
            pl.BlockSpec((1, Hd), lambda i: (0, 0)),              # projector b1
            pl.BlockSpec((Hd, F), lambda i: (0, 0)),              # projector W2 (bf16)
            pl.BlockSpec((1, F), lambda i: (0, 0)),               # projector b2
        ],
        out_specs=pl.BlockSpec((B, F), lambda i: (0, 0)),
        compiler_params=pltpu.CompilerParams(
            dimension_semantics=("arbitrary",),
            vmem_limit_bytes=32 * 1024 * 1024,
        ),
    )(xflat, wc_bf, bc, maskscale, w1, b1, w2_bf, b2)
    return out


# ---------------------------------------------------------------------------
# Deterministic parameter initialization (synthetic; no checkpoint load).
# Conv weight layout: (Cb, K*K*C) with column p = (kh*K + kw)*C + c.
# Projector weights stored (in_features, out_features)  (== PyTorch W.T).
# ---------------------------------------------------------------------------
def init_params(key, c_in=3, backbone_out=128, feature_dim=128):
    hidden = feature_dim * 2
    P = c_in * K * K
    ks = jax.random.split(key, 6)
    he = lambda fan_in: (2.0 / fan_in) ** 0.5
    return {
        "wc": jax.random.normal(ks[0], (backbone_out, P), jnp.float32) * he(P),
        "bc": jax.random.normal(ks[1], (backbone_out, 1), jnp.float32) * 0.01,
        "w1": jax.random.normal(ks[2], (backbone_out, hidden), jnp.float32) * he(backbone_out),
        "b1": jax.random.normal(ks[3], (1, hidden), jnp.float32) * 0.01,
        "w2": jax.random.normal(ks[4], (hidden, feature_dim), jnp.float32) * he(hidden),
        "b2": jax.random.normal(ks[5], (1, feature_dim), jnp.float32) * 0.01,
    }


# ---------------------------------------------------------------------------
# Pure-JAX reference with the same bf16 rounding points as the kernel.
# ---------------------------------------------------------------------------
def reference_features(x, params):
    wc, bc, w1, b1, w2, b2 = (params[k] for k in ("wc", "bc", "w1", "b1", "w2", "b2"))
    B, C, H, W = x.shape
    hp = jax.lax.Precision.HIGHEST
    bf = lambda a: a.astype(jnp.bfloat16).astype(jnp.float32)
    xpad = bf(jnp.pad(x, ((0, 0), (0, 0), (1, 1), (1, 1))))
    cols = [xpad[:, :, kh:kh + H, kw:kw + W] for kh in range(K) for kw in range(K)]
    patches = jnp.stack(cols, axis=1).reshape(B, K * K * C, H * W)    # p = kk*C + c
    conv = jnp.einsum("op,bps->bos", bf(wc), patches, precision=hp)   # (B, Cb, HW)
    conv = jnp.maximum(conv + bc[None, :, :], 0.0)
    pooled = conv.mean(axis=2)                                        # (B, Cb)
    h = jnp.maximum(jnp.dot(pooled, w1, precision=hp) + b1, 0.0)
    f = jnp.maximum(jnp.dot(bf(h), bf(w2), precision=hp) + b2, 0.0)
    sumsq = jnp.sum(f * f, axis=1, keepdims=True)
    return f * jax.lax.rsqrt(jnp.maximum(sumsq, EPS * EPS))


if __name__ == "__main__":
    key = jax.random.PRNGKey(0)
    kx, kp = jax.random.split(key)

    B, C, H, W = 2, 3, 16, 16          # small NCHW input (PyTorch convention)
    x = jax.random.uniform(kx, (B, C, H, W), jnp.float32)

    params = init_params(kp, c_in=C, backbone_out=128, feature_dim=128)

    feats = jax.block_until_ready(jax.jit(extract_features)(x, params))
    ref = reference_features(x, params)

    assert feats.shape == (B, 128), feats.shape
    err = float(jnp.max(jnp.abs(feats - ref)))
    assert jnp.allclose(feats, ref, atol=1e-4, rtol=1e-3), f"mismatch vs reference: {err}"
    # L2-normalized rows should have (near-)unit norm.
    assert jnp.allclose(jnp.linalg.norm(feats, axis=1), 1.0, atol=1e-3)

    print("KERNEL_OK")
</pallas_src>

<mosaic_0001>
module attributes {stable_mosaic.version = 11 : i64} {
  func.func @fused_kernel(%arg0: i32, %arg1: memref<2x3x324xbf16, #tpu.memory_space<vmem>>, %arg2: memref<128x27xbf16, #tpu.memory_space<vmem>>, %arg3: memref<128x1xf32, #tpu.memory_space<vmem>>, %arg4: memref<1x286xf32, #tpu.memory_space<vmem>>, %arg5: memref<128x256xf32, #tpu.memory_space<vmem>>, %arg6: memref<1x256xf32, #tpu.memory_space<vmem>>, %arg7: memref<256x128xbf16, #tpu.memory_space<vmem>>, %arg8: memref<1x128xf32, #tpu.memory_space<vmem>>, %arg9: memref<2x128xf32, #tpu.memory_space<vmem>>) attributes {dimension_semantics = [#tpu.dimension_semantics<arbitrary>], iteration_bounds = array<i64: 1>, scalar_prefetch = 0 : i64, scratch_operands = 0 : i64, tpu.core_type = #tpu.core_type<tc>, window_params = [{pipeline_mode = #tpu.pipeline_mode<synchronous>, transform_indices = @transform_0, window_bounds = array<i64: 2, 3, 324>}, {pipeline_mode = #tpu.pipeline_mode<synchronous>, transform_indices = @transform_1, window_bounds = array<i64: 128, 27>}, {pipeline_mode = #tpu.pipeline_mode<synchronous>, transform_indices = @transform_2, window_bounds = array<i64: 128, 1>}, {pipeline_mode = #tpu.pipeline_mode<synchronous>, transform_indices = @transform_3, window_bounds = array<i64: 1, 286>}, {pipeline_mode = #tpu.pipeline_mode<synchronous>, transform_indices = @transform_4, window_bounds = array<i64: 128, 256>}, {pipeline_mode = #tpu.pipeline_mode<synchronous>, transform_indices = @transform_5, window_bounds = array<i64: 1, 256>}, {pipeline_mode = #tpu.pipeline_mode<synchronous>, transform_indices = @transform_6, window_bounds = array<i64: 256, 128>}, {pipeline_mode = #tpu.pipeline_mode<synchronous>, transform_indices = @transform_7, window_bounds = array<i64: 1, 128>}, {pipeline_mode = #tpu.pipeline_mode<synchronous>, transform_indices = @transform_8, window_bounds = array<i64: 2, 128>}]} {
    %c0 = arith.constant 0 : index
    %c0_0 = arith.constant 0 : index
    %0 = vector.load %arg4[%c0, %c0_0] : memref<1x286xf32, #tpu.memory_space<vmem>>, vector<1x286xf32>
    %c0_1 = arith.constant 0 : index
    %c0_2 = arith.constant 0 : index
    %1 = vector.load %arg5[%c0_1, %c0_2] : memref<128x256xf32, #tpu.memory_space<vmem>>, vector<128x256xf32>
    %c0_3 = arith.constant 0 : index
    %c0_4 = arith.constant 0 : index
    %c0_5 = arith.constant 0 : index
    %2 = vector.load %arg1[%c0_3, %c0_4, %c0_5] : memref<2x3x324xbf16, #tpu.memory_space<vmem>>, vector<1x3x324xbf16>
    %3 = vector.shape_cast %2 : vector<1x3x324xbf16> to vector<3x324xbf16>
    %4 = arith.extf %3 : vector<3x324xbf16> to vector<3x324xf32>
    %5 = vector.extract_strided_slice %4 {offsets = [0, 0], sizes = [3, 286], strides = [1, 1]} : vector<3x324xf32> to vector<3x286xf32>
    %6 = vector.extract_strided_slice %4 {offsets = [0, 1], sizes = [3, 286], strides = [1, 1]} : vector<3x324xf32> to vector<3x286xf32>
    %7 = vector.extract_strided_slice %4 {offsets = [0, 2], sizes = [3, 286], strides = [1, 1]} : vector<3x324xf32> to vector<3x286xf32>
    %8 = vector.extract_strided_slice %4 {offsets = [0, 18], sizes = [3, 286], strides = [1, 1]} : vector<3x324xf32> to vector<3x286xf32>
    %9 = vector.extract_strided_slice %4 {offsets = [0, 19], sizes = [3, 286], strides = [1, 1]} : vector<3x324xf32> to vector<3x286xf32>
    %10 = vector.extract_strided_slice %4 {offsets = [0, 20], sizes = [3, 286], strides = [1, 1]} : vector<3x324xf32> to vector<3x286xf32>
    %11 = vector.extract_strided_slice %4 {offsets = [0, 36], sizes = [3, 286], strides = [1, 1]} : vector<3x324xf32> to vector<3x286xf32>
    %12 = vector.extract_strided_slice %4 {offsets = [0, 37], sizes = [3, 286], strides = [1, 1]} : vector<3x324xf32> to vector<3x286xf32>
    %13 = vector.extract_strided_slice %4 {offsets = [0, 38], sizes = [3, 286], strides = [1, 1]} : vector<3x324xf32> to vector<3x286xf32>
    %14 = tpu.concatenate %5, %6, %7, %8, %9, %10, %11, %12, %13 in 0 : vector<3x286xf32>, vector<3x286xf32>, vector<3x286xf32>, vector<3x286xf32>, vector<3x286xf32>, vector<3x286xf32>, vector<3x286xf32>, vector<3x286xf32>, vector<3x286xf32> -> vector<27x286xf32>
    %15 = arith.truncf %14 : vector<27x286xf32> to vector<27x286xbf16>
    %c0_6 = arith.constant 0 : index
    %c0_7 = arith.constant 0 : index
    %16 = vector.load %arg2[%c0_6, %c0_7] : memref<128x27xbf16, #tpu.memory_space<vmem>>, vector<128x27xbf16>
    %cst = arith.constant dense<0.000000e+00> : vector<128x286xf32>
    %17 = tpu.matmul %16, %15, %cst {dimension_numbers = #tpu.dot_dimension_numbers<[1], [0], [0], [1], [0, 0, 1, 1], [], []>} : vector<128x27xbf16>, vector<27x286xbf16>, vector<128x286xf32> -> vector<128x286xf32>
    %c0_8 = arith.constant 0 : index
    %c0_9 = arith.constant 0 : index
    %18 = vector.load %arg3[%c0_8, %c0_9] : memref<128x1xf32, #tpu.memory_space<vmem>>, vector<128x1xf32>
    %19 = vector.broadcast %18 : vector<128x1xf32> to vector<128x286xf32>
    %20 = arith.addf %17, %19 : vector<128x286xf32>
    %cst_10 = arith.constant 0.000000e+00 : f32
    %21 = vector.broadcast %cst_10 : f32 to vector<128x286xf32>
    %22 = arith.maximumf %20, %21 : vector<128x286xf32>
    %23 = vector.broadcast %0 : vector<1x286xf32> to vector<128x286xf32>
    %24 = arith.mulf %22, %23 : vector<128x286xf32>
    %cst_11 = arith.constant dense<0.000000e+00> : vector<128xf32>
    %25 = vector.multi_reduction <add>, %24, %cst_11 [1] : vector<128x286xf32> to vector<128xf32>
    %26 = vector.shape_cast %25 : vector<128xf32> to vector<128x1xf32>
    %27 = vector.broadcast %26 : vector<128x1xf32> to vector<128x256xf32>
    %28 = arith.mulf %1, %27 : vector<128x256xf32>
    %cst_12 = arith.constant dense<0.000000e+00> : vector<256xf32>
    %29 = vector.multi_reduction <add>, %28, %cst_12 [0] : vector<128x256xf32> to vector<256xf32>
    %30 = vector.shape_cast %29 : vector<256xf32> to vector<1x256xf32>
    %c1 = arith.constant 1 : index
    %c0_13 = arith.constant 0 : index
    %c0_14 = arith.constant 0 : index
    %31 = vector.load %arg1[%c1, %c0_13, %c0_14] : memref<2x3x324xbf16, #tpu.memory_space<vmem>>, vector<1x3x324xbf16>
    %32 = vector.shape_cast %31 : vector<1x3x324xbf16> to vector<3x324xbf16>
    %33 = arith.extf %32 : vector<3x324xbf16> to vector<3x324xf32>
    %34 = vector.extract_strided_slice %33 {offsets = [0, 0], sizes = [3, 286], strides = [1, 1]} : vector<3x324xf32> to vector<3x286xf32>
    %35 = vector.extract_strided_slice %33 {offsets = [0, 1], sizes = [3, 286], strides = [1, 1]} : vector<3x324xf32> to vector<3x286xf32>
    %36 = vector.extract_strided_slice %33 {offsets = [0, 2], sizes = [3, 286], strides = [1, 1]} : vector<3x324xf32> to vector<3x286xf32>
    %37 = vector.extract_strided_slice %33 {offsets = [0, 18], sizes = [3, 286], strides = [1, 1]} : vector<3x324xf32> to vector<3x286xf32>
    %38 = vector.extract_strided_slice %33 {offsets = [0, 19], sizes = [3, 286], strides = [1, 1]} : vector<3x324xf32> to vector<3x286xf32>
    %39 = vector.extract_strided_slice %33 {offsets = [0, 20], sizes = [3, 286], strides = [1, 1]} : vector<3x324xf32> to vector<3x286xf32>
    %40 = vector.extract_strided_slice %33 {offsets = [0, 36], sizes = [3, 286], strides = [1, 1]} : vector<3x324xf32> to vector<3x286xf32>
    %41 = vector.extract_strided_slice %33 {offsets = [0, 37], sizes = [3, 286], strides = [1, 1]} : vector<3x324xf32> to vector<3x286xf32>
    %42 = vector.extract_strided_slice %33 {offsets = [0, 38], sizes = [3, 286], strides = [1, 1]} : vector<3x324xf32> to vector<3x286xf32>
    %43 = tpu.concatenate %34, %35, %36, %37, %38, %39, %40, %41, %42 in 0 : vector<3x286xf32>, vector<3x286xf32>, vector<3x286xf32>, vector<3x286xf32>, vector<3x286xf32>, vector<3x286xf32>, vector<3x286xf32>, vector<3x286xf32>, vector<3x286xf32> -> vector<27x286xf32>
    %44 = arith.truncf %43 : vector<27x286xf32> to vector<27x286xbf16>
    %c0_15 = arith.constant 0 : index
    %c0_16 = arith.constant 0 : index
    %45 = vector.load %arg2[%c0_15, %c0_16] : memref<128x27xbf16, #tpu.memory_space<vmem>>, vector<128x27xbf16>
    %cst_17 = arith.constant dense<0.000000e+00> : vector<128x286xf32>
    %46 = tpu.matmul %45, %44, %cst_17 {dimension_numbers = #tpu.dot_dimension_numbers<[1], [0], [0], [1], [0, 0, 1, 1], [], []>} : vector<128x27xbf16>, vector<27x286xbf16>, vector<128x286xf32> -> vector<128x286xf32>
    %c0_18 = arith.constant 0 : index
    %c0_19 = arith.constant 0 : index
    %47 = vector.load %arg3[%c0_18, %c0_19] : memref<128x1xf32, #tpu.memory_space<vmem>>, vector<128x1xf32>
    %48 = vector.broadcast %47 : vector<128x1xf32> to vector<128x286xf32>
    %49 = arith.addf %46, %48 : vector<128x286xf32>
    %cst_20 = arith.constant 0.000000e+00 : f32
    %50 = vector.broadcast %cst_20 : f32 to vector<128x286xf32>
    %51 = arith.maximumf %49, %50 : vector<128x286xf32>
    %52 = vector.broadcast %0 : vector<1x286xf32> to vector<128x286xf32>
    %53 = arith.mulf %51, %52 : vector<128x286xf32>
    %cst_21 = arith.constant dense<0.000000e+00> : vector<128xf32>
    %54 = vector.multi_reduction <add>, %53, %cst_21 [1] : vector<128x286xf32> to vector<128xf32>
    %55 = vector.shape_cast %54 : vector<128xf32> to vector<128x1xf32>
    %56 = vector.broadcast %55 : vector<128x1xf32> to vector<128x256xf32>
    %57 = arith.mulf %1, %56 : vector<128x256xf32>
    %cst_22 = arith.constant dense<0.000000e+00> : vector<256xf32>
    %58 = vector.multi_reduction <add>, %57, %cst_22 [0] : vector<128x256xf32> to vector<256xf32>
    %59 = vector.shape_cast %58 : vector<256xf32> to vector<1x256xf32>
    %60 = tpu.concatenate %30, %59 in 0 : vector<1x256xf32>, vector<1x256xf32> -> vector<2x256xf32>
    %c0_23 = arith.constant 0 : index
    %c0_24 = arith.constant 0 : index
    %61 = vector.load %arg6[%c0_23, %c0_24] : memref<1x256xf32, #tpu.memory_space<vmem>>, vector<1x256xf32>
    %62 = vector.broadcast %61 : vector<1x256xf32> to vector<2x256xf32>
    %63 = arith.addf %60, %62 : vector<2x256xf32>
    %cst_25 = arith.constant 0.000000e+00 : f32
    %64 = vector.broadcast %cst_25 : f32 to vector<2x256xf32>
    %65 = arith.maximumf %63, %64 : vector<2x256xf32>
    %66 = arith.truncf %65 : vector<2x256xf32> to vector<2x256xbf16>
    %c0_26 = arith.constant 0 : index
    %c0_27 = arith.constant 0 : index
    %67 = vector.load %arg7[%c0_26, %c0_27] : memref<256x128xbf16, #tpu.memory_space<vmem>>, vector<256x128xbf16>
    %cst_28 = arith.constant dense<0.000000e+00> : vector<2x128xf32>
    %68 = tpu.matmul %66, %67, %cst_28 {dimension_numbers = #tpu.dot_dimension_numbers<[1], [0], [0], [1], [0, 0, 1, 1], [], []>} : vector<2x256xbf16>, vector<256x128xbf16>, vector<2x128xf32> -> vector<2x128xf32>
    %c0_29 = arith.constant 0 : index
    %c0_30 = arith.constant 0 : index
    %69 = vector.load %arg8[%c0_29, %c0_30] : memref<1x128xf32, #tpu.memory_space<vmem>>, vector<1x128xf32>
    %70 = vector.broadcast %69 : vector<1x128xf32> to vector<2x128xf32>
    %71 = arith.addf %68, %70 : vector<2x128xf32>
    %cst_31 = arith.constant 0.000000e+00 : f32
    %72 = vector.broadcast %cst_31 : f32 to vector<2x128xf32>
    %73 = arith.maximumf %71, %72 : vector<2x128xf32>
    %74 = arith.mulf %73, %73 : vector<2x128xf32>
    %cst_32 = arith.constant dense<0.000000e+00> : vector<2xf32>
    %75 = vector.multi_reduction <add>, %74, %cst_32 [1] : vector<2x128xf32> to vector<2xf32>
    %76 = vector.shape_cast %75 : vector<2xf32> to vector<2x1xf32>
    %cst_33 = arith.constant 1.000000e-24 : f32
    %77 = vector.broadcast %cst_33 : f32 to vector<2x1xf32>
    %78 = arith.maximumf %76, %77 : vector<2x1xf32>
    %79 = math.rsqrt %78 : vector<2x1xf32>
    %80 = vector.broadcast %79 : vector<2x1xf32> to vector<2x128xf32>
    %81 = arith.mulf %73, %80 : vector<2x128xf32>
    %c0_34 = arith.constant 0 : index
    %c0_35 = arith.constant 0 : index
    %82 = vector.load %arg9[%c0_34, %c0_35] : memref<2x128xf32, #tpu.memory_space<vmem>>, vector<2x128xf32>
    tpu.vector_store %arg9[%c0_34, %c0_35], %81 {strides = array<i32>} : memref<2x128xf32, #tpu.memory_space<vmem>>, vector<2x128xf32>,
    return
  }
  func.func @transform_0(%arg0: i32) -> (i32, i32, i32) {
    %c0_i32 = arith.constant 0 : i32
    %c0_i32_0 = arith.constant 0 : i32
    %c0_i32_1 = arith.constant 0 : i32
    %c0_i32_2 = arith.constant 0 : i32
    return %c0_i32, %c0_i32_0, %c0_i32_1 : i32, i32, i32
  }
  func.func @transform_1(%arg0: i32) -> (i32, i32) {
    %c0_i32 = arith.constant 0 : i32
    %c0_i32_0 = arith.constant 0 : i32
    %c0_i32_1 = arith.constant 0 : i32
    return %c0_i32, %c0_i32_0 : i32, i32
  }
  func.func @transform_2(%arg0: i32) -> (i32, i32) {
    %c0_i32 = arith.constant 0 : i32
    %c0_i32_0 = arith.constant 0 : i32
    %c0_i32_1 = arith.constant 0 : i32
    return %c0_i32, %c0_i32_0 : i32, i32
  }
  func.func @transform_3(%arg0: i32) -> (i32, i32) {
    %c0_i32 = arith.constant 0 : i32
    %c0_i32_0 = arith.constant 0 : i32
    %c0_i32_1 = arith.constant 0 : i32
    return %c0_i32, %c0_i32_0 : i32, i32
  }
  func.func @transform_4(%arg0: i32) -> (i32, i32) {
    %c0_i32 = arith.constant 0 : i32
    %c0_i32_0 = arith.constant 0 : i32
    %c0_i32_1 = arith.constant 0 : i32
    return %c0_i32, %c0_i32_0 : i32, i32
  }
  func.func @transform_5(%arg0: i32) -> (i32, i32) {
    %c0_i32 = arith.constant 0 : i32
    %c0_i32_0 = arith.constant 0 : i32
    %c0_i32_1 = arith.constant 0 : i32
    return %c0_i32, %c0_i32_0 : i32, i32
  }
  func.func @transform_6(%arg0: i32) -> (i32, i32) {
    %c0_i32 = arith.constant 0 : i32
    %c0_i32_0 = arith.constant 0 : i32
    %c0_i32_1 = arith.constant 0 : i32
    return %c0_i32, %c0_i32_0 : i32, i32
  }
  func.func @transform_7(%arg0: i32) -> (i32, i32) {
    %c0_i32 = arith.constant 0 : i32
    %c0_i32_0 = arith.constant 0 : i32
    %c0_i32_1 = arith.constant 0 : i32
    return %c0_i32, %c0_i32_0 : i32, i32
  }
  func.func @transform_8(%arg0: i32) -> (i32, i32) {
    %c0_i32 = arith.constant 0 : i32
    %c0_i32_0 = arith.constant 0 : i32
    %c0_i32_1 = arith.constant 0 : i32
    return %c0_i32, %c0_i32_0 : i32, i32
  }
}

</mosaic_0001>

<llo_original>
// kernel: extract_features.1
$region0: #{extract_features.1}
  #allocation0 [shape = 'u32[]', space=smem, size = 0x4, offset = 0x4, fixed_abs, tag = 'smem constant byte address 0x4 - core index']
  #allocation1 [shape = 'u32[144,128]{1,0:T(1,128)}', space=vmem, size = 0x12000, scoped, tag = 'internal scratch']
  %s0 = inlined_call_operand.vmem [shape: bf16[2,3,324], index: 0, kind: input, shape index: {}]
  %s1 = inlined_call_operand.vmem [shape: bf16[128,27], index: 1, kind: input, shape index: {}]
  %s2 = inlined_call_operand.vmem [shape: f32[128,1], index: 2, kind: input, shape index: {}]
  %s3 = inlined_call_operand.vmem [shape: f32[1,286], index: 3, kind: input, shape index: {}]
  %s4 = inlined_call_operand.vmem [shape: f32[128,256], index: 4, kind: input, shape index: {}]
  %s5 = inlined_call_operand.vmem [shape: f32[1,256], index: 5, kind: input, shape index: {}]
  %s6 = inlined_call_operand.vmem [shape: bf16[256,128], index: 6, kind: input, shape index: {}]
  %s7 = inlined_call_operand.vmem [shape: f32[1,128], index: 7, kind: input, shape index: {}]
  %s8 = inlined_call_operand.hbm [shape: f32[2,128], index: 8, kind: output, shape index: {}]
  %s9 = sld [smem:[#allocation0]]
  $region42: #{extract_features.1} parent=0
    _
  %s11 = ssub.s32 1, %s9
  %s12 = scalar_select 0, %s11, %s9
  $region1: #{extract_features.1} parent=0
    #allocation2 [shape = 'u8[1024]{0}', space=vmem, size = 0x400, scoped, tag = 'output window, operand 0, single buffered']
    #allocation3 [shape = 's32[1]{0}', space=sflag, size = 0x4, scoped, tag = 'scoped memory for extract_features.1']
    %13 = vsyncpa [#allocation3], 0
    // Predicated region
    $region2: #{extract_features.1} parent=1 // pred_check
      _
    $region3: #{extract_features.1} parent=1 // pred_check_branch
      %15 = sbr.rel (0) target = $region5
    $region4: #{extract_features.1} parent=1 // pred_region
      _
    $region5: #{extract_features.1} parent=1 // pred_fallthru
      _
    // Predicated region
    $region6: #{extract_features.1} parent=1 // pred_check
      _
    $region7: #{extract_features.1} parent=1 // pred_check_branch
      %17 = sbr.rel (0) target = $region9
    $region8: #{extract_features.1} parent=1 // pred_region
      _
    $region9: #{extract_features.1} parent=1 // pred_fallthru
      _
    // Predicated region
    $region10: #{extract_features.1} parent=1 // pred_check
      _
    $region11: #{extract_features.1} parent=1 // pred_check_branch
      %19 = sbr.rel (0) target = $region13
    $region12: #{extract_features.1} parent=1 // pred_region
      _
    $region13: #{extract_features.1} parent=1 // pred_fallthru
      _
    // Predicated region
    $region14: #{extract_features.1} parent=1 // pred_check
      _
    $region15: #{extract_features.1} parent=1 // pred_check_branch
      %21 = sbr.rel (0) target = $region17
    $region16: #{extract_features.1} parent=1 // pred_region
      _
    $region17: #{extract_features.1} parent=1 // pred_fallthru
      _
    // Predicated region
    $region18: #{extract_features.1} parent=1 // pred_check
      _
    $region19: #{extract_features.1} parent=1 // pred_check_branch
      %23 = sbr.rel (0) target = $region21
    $region20: #{extract_features.1} parent=1 // pred_region
      _
    $region21: #{extract_features.1} parent=1 // pred_fallthru
      _
    // Predicated region
    $region22: #{extract_features.1} parent=1 // pred_check
      _
    $region23: #{extract_features.1} parent=1 // pred_check_branch
      %25 = sbr.rel (0) target = $region25
    $region24: #{extract_features.1} parent=1 // pred_region
      _
    $region25: #{extract_features.1} parent=1 // pred_fallthru
      _
    // Predicated region
    $region26: #{extract_features.1} parent=1 // pred_check
      _
    $region27: #{extract_features.1} parent=1 // pred_check_branch
      %27 = sbr.rel (0) target = $region29
    $region28: #{extract_features.1} parent=1 // pred_region
      _
    $region29: #{extract_features.1} parent=1 // pred_fallthru
      _
    // Predicated region
    $region30: #{extract_features.1} parent=1 // pred_check
      _
    $region31: #{extract_features.1} parent=1 // pred_check_branch
      %29 = sbr.rel (0) target = $region33
    $region32: #{extract_features.1} parent=1 // pred_region
      _
    $region33: #{extract_features.1} parent=1 // pred_fallthru
      _
    %v31 = vld [vmem:[%s3] sm:$0x7]
    %v32 = vld [vmem:[%s4] sm:$0xff]
    %v33 = vld [vmem:[%s4 + $0x8] sm:$0xff]
    %v34 = vld [vmem:[%s4 + $0x10] sm:$0xff]
    %v35 = vld [vmem:[%s4 + $0x18] sm:$0xff]
    %v36 = vld [vmem:[%s4 + $0x20] sm:$0xff]
    %v37 = vld [vmem:[%s4 + $0x28] sm:$0xff]
    %v38 = vld [vmem:[%s4 + $0x30] sm:$0xff]
    %v39 = vld [vmem:[%s4 + $0x38] sm:$0xff]
    %v40 = vld [vmem:[%s4 + $0x40] sm:$0xff]
    %v41 = vld [vmem:[%s4 + $0x48] sm:$0xff]
    %v42 = vld [vmem:[%s4 + $0x50] sm:$0xff]
    %v43 = vld [vmem:[%s4 + $0x58] sm:$0xff]
    %v44 = vld [vmem:[%s4 + $0x60] sm:$0xff]
    %v45 = vld [vmem:[%s4 + $0x68] sm:$0xff]
    %v46 = vld [vmem:[%s4 + $0x70] sm:$0xff]
    %v47 = vld [vmem:[%s4 + $0x78] sm:$0xff]
    %v48 = vld [vmem:[%s4 + $0x80] sm:$0xff]
    %v49 = vld [vmem:[%s4 + $0x88] sm:$0xff]
    %v50 = vld [vmem:[%s4 + $0x90] sm:$0xff]
    %v51 = vld [vmem:[%s4 + $0x98] sm:$0xff]
    %v52 = vld [vmem:[%s4 + $0xa0] sm:$0xff]
    %v53 = vld [vmem:[%s4 + $0xa8] sm:$0xff]
    %v54 = vld [vmem:[%s4 + $0xb0] sm:$0xff]
    %v55 = vld [vmem:[%s4 + $0xb8] sm:$0xff]
    %v56 = vld [vmem:[%s4 + $0xc0] sm:$0xff]
    %v57 = vld [vmem:[%s4 + $0xc8] sm:$0xff]
    %v58 = vld [vmem:[%s4 + $0xd0] sm:$0xff]
    %v59 = vld [vmem:[%s4 + $0xd8] sm:$0xff]
    %v60 = vld [vmem:[%s4 + $0xe0] sm:$0xff]
    %v61 = vld [vmem:[%s4 + $0xe8] sm:$0xff]
    %v62 = vld [vmem:[%s4 + $0xf0] sm:$0xff]
    %v63 = vld [vmem:[%s4 + $0xf8] sm:$0xff]
    %v64 = vld [vmem:[%s0] sm:$0x3f]
    %v65 = vunpack.c.l.bf16 %v64
    %v66 = vunpack.c.h.bf16 %v64
    %v69 = vcombine.high %v65, %v65
    %v71 = vrot.slane %v65, 5
    %v72 = vrot.slane %v69, 5
    %v73 = vrot.slane %v66, 5
    %74 = vrot.lane.b32.xlu0 %v71, 127
    %v75 = vpop.permute.xlu0 %74
    %76 = vrot.lane.b32.xlu0 %v72, 127
    %v77 = vpop.permute.xlu0 %76
    %78 = vrot.lane.b32.xlu0 %v73, 127
    %v79 = vpop.permute.xlu0 %78
    %vm80 = vcmask 1039360
    %v81 = vsel %vm80, %v75, %v77
    %v82 = vsel %vm80, %v77, %v79
    %v86 = vrot.slane %v65, 2
    %v87 = vrot.slane %v69, 2
    %v88 = vrot.slane %v66, 2
    %89 = vrot.lane.b32.xlu0 %v86, 126
    %v90 = vpop.permute.xlu0 %89
    %91 = vrot.lane.b32.xlu0 %v87, 126
    %v92 = vpop.permute.xlu0 %91
    %93 = vrot.lane.b32.xlu0 %v88, 126
    %v94 = vpop.permute.xlu0 %93
    %vm95 = vcmask 1031168
    %v96 = vsel %vm95, %v90, %v92
    %v97 = vsel %vm95, %v92, %v94
    %v101 = vrot.slane %v65, 7
    %v102 = vrot.slane %v69, 7
    %v103 = vrot.slane %v66, 7
    %104 = vrot.lane.b32.xlu0 %v101, 110
    %v105 = vpop.permute.xlu0 %104
    %106 = vrot.lane.b32.xlu0 %v102, 110
    %v107 = vpop.permute.xlu0 %106
    %108 = vrot.lane.b32.xlu0 %v103, 110
    %v109 = vpop.permute.xlu0 %108
    %vm110 = vcmask 900096
    %v111 = vsel %vm110, %v105, %v107
    %v112 = vsel %vm110, %v107, %v109
    %v116 = vcombine.low %v65, %v65
    %v117 = vcombine.low %v66, %v66
    %118 = vrot.lane.b32.xlu0 %v116, 109
    %v119 = vpop.permute.xlu0 %118
    %120 = vrot.lane.b32.xlu0 %v65, 109
    %v121 = vpop.permute.xlu0 %120
    %122 = vrot.lane.b32.xlu0 %v117, 109
    %v123 = vpop.permute.xlu0 %122
    %vm124 = vcmask 891904
    %v125 = vsel %vm124, %v119, %v121
    %v126 = vsel %vm124, %v121, %v123
    %v130 = vrot.slane %v65, 1
    %v131 = vrot.slane %v69, 1
    %v132 = vrot.slane %v66, 1
    %133 = vrot.lane.b32.xlu0 %v130, 108
    %v134 = vpop.permute.xlu0 %133
    %135 = vrot.lane.b32.xlu0 %v131, 108
    %v136 = vpop.permute.xlu0 %135
    %137 = vrot.lane.b32.xlu0 %v132, 108
    %v138 = vpop.permute.xlu0 %137
    %vm139 = vcmask 883712
    %v140 = vsel %vm139, %v134, %v136
    %v141 = vsel %vm139, %v136, %v138
    %v145 = vrot.slane %v65, 6
    %v146 = vrot.slane %v69, 6
    %v147 = vrot.slane %v66, 6
    %148 = vrot.lane.b32.xlu0 %v145, 92
    %v149 = vpop.permute.xlu0 %148
    %150 = vrot.lane.b32.xlu0 %v146, 92
    %v151 = vpop.permute.xlu0 %150
    %152 = vrot.lane.b32.xlu0 %v147, 92
    %v153 = vpop.permute.xlu0 %152
    %vm154 = vcmask 752640
    %v155 = vsel %vm154, %v149, %v151
    %v156 = vsel %vm154, %v151, %v153
    %v160 = vrot.slane %v65, 3
    %v161 = vrot.slane %v69, 3
    %v162 = vrot.slane %v66, 3
    %163 = vrot.lane.b32.xlu0 %v160, 91
    %v164 = vpop.permute.xlu0 %163
    %165 = vrot.lane.b32.xlu0 %v161, 91
    %v166 = vpop.permute.xlu0 %165
    %167 = vrot.lane.b32.xlu0 %v162, 91
    %v168 = vpop.permute.xlu0 %167
    %vm169 = vcmask 744448
    %v170 = vsel %vm169, %v164, %v166
    %v171 = vsel %vm169, %v166, %v168
    %175 = vrot.lane.b32.xlu0 %v65, 90
    %v176 = vpop.permute.xlu0 %175
    %177 = vrot.lane.b32.xlu0 %v69, 90
    %v178 = vpop.permute.xlu0 %177
    %179 = vrot.lane.b32.xlu0 %v66, 90
    %v180 = vpop.permute.xlu0 %179
    %vm181 = vcmask 736256
    %v182 = vsel %vm181, %v176, %v178
    %v183 = vsel %vm181, %v178, %v180
    %vm187 = vcmask 1042432
    %v188 = vsel %vm187, %v65, %v81
    %v189 = vsel %vm187, %v69, %v82
    %v190 = vsel %vm187, %v66, %v79
    %vm191 = vcmask 1045504
    %v192 = vsel %vm191, %v188, %v96
    %v193 = vsel %vm191, %v189, %v97
    %v194 = vsel %vm191, %v190, %v94
    %vm195 = vcmask 1040384
    %v196 = vsel %vm195, %v96, %v111
    %v197 = vsel %vm195, %v97, %v112
    %v198 = vsel %vm195, %v94, %v109
    %vm199 = vcmask 1043456
    %v200 = vsel %vm199, %v196, %v125
    %v201 = vsel %vm199, %v197, %v126
    %v202 = vsel %vm199, %v198, %v123
    %vm203 = vcmask 1046528
    %v204 = vsel %vm203, %v200, %v140
    %v205 = vsel %vm203, %v201, %v141
    %v206 = vsel %vm203, %v202, %v138
    %vm207 = vcmask 1041408
    %v208 = vsel %vm207, %v140, %v155
    %v209 = vsel %vm207, %v141, %v156
    %v210 = vsel %vm207, %v138, %v153
    %vm211 = vcmask 1044480
    %v212 = vsel %vm211, %v208, %v170
    %v213 = vsel %vm211, %v209, %v171
    %v214 = vsel %vm211, %v210, %v168
    %v215 = vpack.c.bf16 %v204, %v192
    %v216 = vpack.c.bf16 %v205, %v193
    %v217 = vpack.c.bf16 %v206, %v194
    %v218 = vpack.c.bf16 %v182, %v212
    %v219 = vpack.c.bf16 %v183, %v213
    %v220 = vpack.c.bf16 %v180, %v214
    %v221 = vld [vmem:[%s1] sm:$0xf]
    %v222 = vld [vmem:[%s1 + $0x4] sm:$0xf]
    %v223 = vld [vmem:[%s1 + $0x8] sm:$0xf]
    %v224 = vld [vmem:[%s1 + $0xc] sm:$0xf]
    %v225 = vld [vmem:[%s1 + $0x10] sm:$0xf]
    %v226 = vld [vmem:[%s1 + $0x14] sm:$0xf]
    %v227 = vld [vmem:[%s1 + $0x18] sm:$0xf]
    %v228 = vld [vmem:[%s1 + $0x1c] sm:$0xf]
    %v229 = vld [vmem:[%s1 + $0x20] sm:$0xf]
    %v230 = vld [vmem:[%s1 + $0x24] sm:$0xf]
    %v231 = vld [vmem:[%s1 + $0x28] sm:$0xf]
    %v232 = vld [vmem:[%s1 + $0x2c] sm:$0xf]
    %v233 = vld [vmem:[%s1 + $0x30] sm:$0xf]
    %v234 = vld [vmem:[%s1 + $0x34] sm:$0xf]
    %v235 = vld [vmem:[%s1 + $0x38] sm:$0xf]
    %v236 = vld [vmem:[%s1 + $0x3c] sm:$0xf]
    %v237 = vld [vmem:[%s2] sm:$0xff]
    %v238 = vld [vmem:[%s2 + $0x8] sm:$0xff]
    %v239 = vld [vmem:[%s2 + $0x10] sm:$0xff]
    %v240 = vld [vmem:[%s2 + $0x18] sm:$0xff]
    %v241 = vld [vmem:[%s2 + $0x20] sm:$0xff]
    %v242 = vld [vmem:[%s2 + $0x28] sm:$0xff]
    %v243 = vld [vmem:[%s2 + $0x30] sm:$0xff]
    %v244 = vld [vmem:[%s2 + $0x38] sm:$0xff]
    %v245 = vld [vmem:[%s2 + $0x40] sm:$0xff]
    %v246 = vld [vmem:[%s2 + $0x48] sm:$0xff]
    %v247 = vld [vmem:[%s2 + $0x50] sm:$0xff]
    %v248 = vld [vmem:[%s2 + $0x58] sm:$0xff]
    %v249 = vld [vmem:[%s2 + $0x60] sm:$0xff]
    %v250 = vld [vmem:[%s2 + $0x68] sm:$0xff]
    %v251 = vld [vmem:[%s2 + $0x70] sm:$0xff]
    %v252 = vld [vmem:[%s2 + $0x78] sm:$0xff]
    %254 = vset.pattern.permute.xlu0 0
    %255 = vperm.xlu0 %254, %v237
    %v256 = vpop.permute.xlu0 %255
    %259 = vset.pattern.permute.xlu0 0
    %260 = vperm.xlu0 %259, %v238
    %v261 = vpop.permute.xlu0 %260
    %264 = vset.pattern.permute.xlu0 0
    %265 = vperm.xlu0 %264, %v239
    %v266 = vpop.permute.xlu0 %265
    %269 = vset.pattern.permute.xlu0 0
    %270 = vperm.xlu0 %269, %v240
    %v271 = vpop.permute.xlu0 %270
    %274 = vset.pattern.permute.xlu0 0
    %275 = vperm.xlu0 %274, %v241
    %v276 = vpop.permute.xlu0 %275
    %279 = vset.pattern.permute.xlu0 0
    %280 = vperm.xlu0 %279, %v242
    %v281 = vpop.permute.xlu0 %280
    %284 = vset.pattern.permute.xlu0 0
    %285 = vperm.xlu0 %284, %v243
    %v286 = vpop.permute.xlu0 %285
    %289 = vset.pattern.permute.xlu0 0
    %290 = vperm.xlu0 %289, %v244
    %v291 = vpop.permute.xlu0 %290
    %294 = vset.pattern.permute.xlu0 0
    %295 = vperm.xlu0 %294, %v245
    %v296 = vpop.permute.xlu0 %295
    %299 = vset.pattern.permute.xlu0 0
    %300 = vperm.xlu0 %299, %v246
    %v301 = vpop.permute.xlu0 %300
    %304 = vset.pattern.permute.xlu0 0
    %305 = vperm.xlu0 %304, %v247
    %v306 = vpop.permute.xlu0 %305
    %309 = vset.pattern.permute.xlu0 0
    %310 = vperm.xlu0 %309, %v248
    %v311 = vpop.permute.xlu0 %310
    %314 = vset.pattern.permute.xlu0 0
    %315 = vperm.xlu0 %314, %v249
    %v316 = vpop.permute.xlu0 %315
    %319 = vset.pattern.permute.xlu0 0
    %320 = vperm.xlu0 %319, %v250
    %v321 = vpop.permute.xlu0 %320
    %324 = vset.pattern.permute.xlu0 0
    %325 = vperm.xlu0 %324, %v251
    %v326 = vpop.permute.xlu0 %325
    %329 = vset.pattern.permute.xlu0 0
    %330 = vperm.xlu0 %329, %v252
    %v331 = vpop.permute.xlu0 %330
    %v349 = vunpack.c.l.b16 %v221
    %v350 = vunpack.c.l.b16 %v222
    %v351 = vunpack.c.l.b16 %v223
    %v352 = vunpack.c.l.b16 %v224
    %v353 = vunpack.c.l.b16 %v225
    %v354 = vunpack.c.l.b16 %v226
    %v355 = vunpack.c.l.b16 %v227
    %v356 = vunpack.c.l.b16 %v228
    %v357 = vunpack.c.l.b16 %v229
    %v358 = vunpack.c.l.b16 %v230
    %v359 = vunpack.c.l.b16 %v231
    %v360 = vunpack.c.l.b16 %v232
    %v361 = vunpack.c.l.b16 %v233
    %v362 = vunpack.c.l.b16 %v234
    %v363 = vunpack.c.l.b16 %v235
    %v364 = vunpack.c.l.b16 %v236
    %v365 = vpack.c.b16 %v350, %v349
    %v366 = vpack.c.b16 %v352, %v351
    %v367 = vpack.c.b16 %v354, %v353
    %v368 = vpack.c.b16 %v356, %v355
    %v369 = vpack.c.b16 %v358, %v357
    %v370 = vpack.c.b16 %v360, %v359
    %v371 = vpack.c.b16 %v362, %v361
    %v372 = vpack.c.b16 %v364, %v363
    %vm373 = vcmask 220160
    %v375 = vsel %vm373, %v365, 0
    %v378 = vsel %vm373, %v366, 0
    %v381 = vsel %vm373, %v367, 0
    %v384 = vsel %vm373, %v368, 0
    %v387 = vsel %vm373, %v369, 0
    %v390 = vsel %vm373, %v370, 0
    %v393 = vsel %vm373, %v371, 0
    %v396 = vsel %vm373, %v372, 0
    %v398 = vsel %vm211, 4294967295, 65535
    %v399 = vsel %vm191, %v398, 0
    %v401 = vand.u32 %v218, %v399
    %v404 = vand.u32 %v219, %v399
    %v407 = vand.u32 %v220, %v399
    %409 = vmatprep.subr.bf16.mxu0 0
    %410 = vmatpush1.bf16.msra.mxu0 0
    %411 = vmatprep.subr.bf16.mxu0 0
    %412 = vmatpush1.bf16.msra.mxu0 0
    %413 = vmatprep.subr.bf16.mxu0 0
    %414 = vmatpush1.bf16.msra.mxu0 0
    %415 = vmatprep.subr.bf16.mxu0 0
    %416 = vmatpush1.bf16.msra.mxu0 0
    %417 = vmatprep.subr.bf16.mxu0 0
    %418 = vmatpush1.bf16.msra.mxu0 0
    %419 = vmatprep.subr.bf16.mxu0 0
    %420 = vmatpush1.bf16.msra.mxu0 0
    %421 = vmatprep.subr.bf16.mxu0 %v404
    %422 = vmatpush1.bf16.msra.mxu0 %v401
    %423 = vmatprep.subr.bf16.mxu0 %v216
    %424 = vmatpush1.bf16.msra.mxu0 %v215
    %425 = vmatprep.subr.bf16.mxu0 0
    %426 = vmatpush2.bf16.msra.mxu0 0
    %427 = vmatprep.subr.bf16.mxu0 0
    %428 = vmatpush2.bf16.msra.mxu0 0
    %429 = vmatprep.subr.bf16.mxu0 0
    %430 = vmatpush2.bf16.msra.mxu0 0
    %431 = vmatprep.subr.bf16.mxu0 0
    %432 = vmatpush2.bf16.msra.mxu0 0
    %433 = vmatprep.subr.bf16.mxu0 0
    %434 = vmatpush2.bf16.msra.mxu0 0
    %435 = vmatprep.subr.bf16.mxu0 0
    %436 = vmatpush2.bf16.msra.mxu0 0
    %437 = vmatprep.subr.bf16.mxu0 0
    %438 = vmatpush2.bf16.msra.mxu0 0
    %439 = vmatprep.subr.bf16.mxu0 0
    %440 = vmatpush2.bf16.msra.mxu0 0
    %441 = vmatprep.mubr.bf16.mxu0 0
    %442 = vmatmul.mubr.bf16.gmra.mxu0 %v375
    %v443 = vpop.f32.mrf.mxu0
    %v444 = vadd.f32 %v256, %v443
    %v445 = vpop.f32.mrf.mxu0
    %v446 = vadd.f32 %v256, %v445
    %v447 = vpop.f32.mrf.mxu0
    %v448 = vadd.f32 %v261, %v447
    %v449 = vpop.f32.mrf.mxu0
    %v450 = vadd.f32 %v261, %v449
    %451 = vmatprep.mubr.bf16.mxu0 0
    %452 = vmatmul.mubr.bf16.gmra.mxu0 %v378
    %v453 = vpop.f32.mrf.mxu0
    %v454 = vadd.f32 %v266, %v453
    %v455 = vpop.f32.mrf.mxu0
    %v456 = vadd.f32 %v266, %v455
    %v457 = vpop.f32.mrf.mxu0
    %v458 = vadd.f32 %v271, %v457
    %v459 = vpop.f32.mrf.mxu0
    %v460 = vadd.f32 %v271, %v459
    %461 = vmatprep.mubr.bf16.mxu0 0
    %462 = vmatmul.mubr.bf16.gmra.mxu0 %v381
    %v463 = vpop.f32.mrf.mxu0
    %v464 = vadd.f32 %v276, %v463
    %v465 = vpop.f32.mrf.mxu0
    %v466 = vadd.f32 %v276, %v465
    %v467 = vpop.f32.mrf.mxu0
    %v468 = vadd.f32 %v281, %v467
    %v469 = vpop.f32.mrf.mxu0
    %v470 = vadd.f32 %v281, %v469
    %471 = vmatprep.mubr.bf16.mxu0 0
    %472 = vmatmul.mubr.bf16.gmra.mxu0 %v384
    %v473 = vpop.f32.mrf.mxu0
    %v474 = vadd.f32 %v286, %v473
    %v475 = vpop.f32.mrf.mxu0
    %v476 = vadd.f32 %v286, %v475
    %v477 = vpop.f32.mrf.mxu0
    %v478 = vadd.f32 %v291, %v477
    %v479 = vpop.f32.mrf.mxu0
    %v480 = vadd.f32 %v291, %v479
    %481 = vmatprep.mubr.bf16.mxu0 0
    %482 = vmatmul.mubr.bf16.gmra.mxu0 %v387
    %v483 = vpop.f32.mrf.mxu0
    %v484 = vadd.f32 %v296, %v483
    %v485 = vpop.f32.mrf.mxu0
    %v486 = vadd.f32 %v296, %v485
    %v487 = vpop.f32.mrf.mxu0
    %v488 = vadd.f32 %v301, %v487
    %v489 = vpop.f32.mrf.mxu0
    %v490 = vadd.f32 %v301, %v489
    %491 = vmatprep.mubr.bf16.mxu0 0
    %492 = vmatmul.mubr.bf16.gmra.mxu0 %v390
    %v493 = vpop.f32.mrf.mxu0
    %v494 = vadd.f32 %v306, %v493
    %v495 = vpop.f32.mrf.mxu0
    %v496 = vadd.f32 %v306, %v495
    %v497 = vpop.f32.mrf.mxu0
    %v498 = vadd.f32 %v311, %v497
    %v499 = vpop.f32.mrf.mxu0
    %v500 = vadd.f32 %v311, %v499
    %501 = vmatprep.mubr.bf16.mxu0 0
    %502 = vmatmul.mubr.bf16.gmra.mxu0 %v393
    %v503 = vpop.f32.mrf.mxu0
    %v504 = vadd.f32 %v316, %v503
    %v505 = vpop.f32.mrf.mxu0
    %v506 = vadd.f32 %v316, %v505
    %v507 = vpop.f32.mrf.mxu0
    %v508 = vadd.f32 %v321, %v507
    %v509 = vpop.f32.mrf.mxu0
    %v510 = vadd.f32 %v321, %v509
    %511 = vmatprep.mubr.bf16.mxu0 0
    %512 = vmatmul.mubr.bf16.gmra.mxu0 %v396
    %v513 = vpop.f32.mrf.mxu0
    %v514 = vadd.f32 %v326, %v513
    %v515 = vpop.f32.mrf.mxu0
    %v516 = vadd.f32 %v326, %v515
    %v517 = vpop.f32.mrf.mxu0
    %v518 = vadd.f32 %v331, %v517
    %v519 = vpop.f32.mrf.mxu0
    %v520 = vadd.f32 %v331, %v519
    %521 = vdwg.mxu0
    %522 = vmatprep.subr.bf16.mxu0 0
    %523 = vmatpush1.bf16.msra.mxu0 0
    %524 = vmatprep.subr.bf16.mxu0 0
    %525 = vmatpush1.bf16.msra.mxu0 0
    %526 = vmatprep.subr.bf16.mxu0 0
    %527 = vmatpush1.bf16.msra.mxu0 0
    %528 = vmatprep.subr.bf16.mxu0 0
    %529 = vmatpush1.bf16.msra.mxu0 0
    %530 = vmatprep.subr.bf16.mxu0 0
    %531 = vmatpush1.bf16.msra.mxu0 0
    %532 = vmatprep.subr.bf16.mxu0 0
    %533 = vmatpush1.bf16.msra.mxu0 0
    %534 = vmatprep.subr.bf16.mxu0 0
    %535 = vmatpush1.bf16.msra.mxu0 %v407
    %536 = vmatprep.subr.bf16.mxu0 0
    %537 = vmatpush1.bf16.msra.mxu0 %v217
    %538 = vmatprep.subr.bf16.mxu0 0
    %539 = vmatpush2.bf16.msra.mxu0 0
    %540 = vmatprep.subr.bf16.mxu0 0
    %541 = vmatpush2.bf16.msra.mxu0 0
    %542 = vmatprep.subr.bf16.mxu0 0
    %543 = vmatpush2.bf16.msra.mxu0 0
    %544 = vmatprep.subr.bf16.mxu0 0
    %545 = vmatpush2.bf16.msra.mxu0 0
    %546 = vmatprep.subr.bf16.mxu0 0
    %547 = vmatpush2.bf16.msra.mxu0 0
    %548 = vmatprep.subr.bf16.mxu0 0
    %549 = vmatpush2.bf16.msra.mxu0 0
    %550 = vmatprep.subr.bf16.mxu0 0
    %551 = vmatpush2.bf16.msra.mxu0 0
    %552 = vmatprep.subr.bf16.mxu0 0
    %553 = vmatpush2.bf16.msra.mxu0 0
    %554 = vmatprep.mubr.bf16.mxu0 0
    %555 = vmatmul.mubr.bf16.gmra.mxu0 %v375
    %v556 = vpop.f32.mrf.mxu0
    %v557 = vadd.f32 %v256, %v556
    %v558 = vpop.f32.mrf.mxu0
    %v559 = vpop.f32.mrf.mxu0
    %v560 = vadd.f32 %v261, %v559
    %v561 = vpop.f32.mrf.mxu0
    %562 = vmatprep.mubr.bf16.mxu0 0
    %563 = vmatmul.mubr.bf16.gmra.mxu0 %v378
    %v564 = vpop.f32.mrf.mxu0
    %v565 = vadd.f32 %v266, %v564
    %v566 = vpop.f32.mrf.mxu0
    %v567 = vpop.f32.mrf.mxu0
    %v568 = vadd.f32 %v271, %v567
    %v569 = vpop.f32.mrf.mxu0
    %570 = vmatprep.mubr.bf16.mxu0 0
    %571 = vmatmul.mubr.bf16.gmra.mxu0 %v381
    %v572 = vpop.f32.mrf.mxu0
    %v573 = vadd.f32 %v276, %v572
    %v574 = vpop.f32.mrf.mxu0
    %v575 = vpop.f32.mrf.mxu0
    %v576 = vadd.f32 %v281, %v575
    %v577 = vpop.f32.mrf.mxu0
    %578 = vmatprep.mubr.bf16.mxu0 0
    %579 = vmatmul.mubr.bf16.gmra.mxu0 %v384
    %v580 = vpop.f32.mrf.mxu0
    %v581 = vadd.f32 %v286, %v580
    %v582 = vpop.f32.mrf.mxu0
    %v583 = vpop.f32.mrf.mxu0
    %v584 = vadd.f32 %v291, %v583
    %v585 = vpop.f32.mrf.mxu0
    %586 = vmatprep.mubr.bf16.mxu0 0
    %587 = vmatmul.mubr.bf16.gmra.mxu0 %v387
    %v588 = vpop.f32.mrf.mxu0
    %v589 = vadd.f32 %v296, %v588
    %v590 = vpop.f32.mrf.mxu0
    %v591 = vpop.f32.mrf.mxu0
    %v592 = vadd.f32 %v301, %v591
    %v593 = vpop.f32.mrf.mxu0
    %594 = vmatprep.mubr.bf16.mxu0 0
    %595 = vmatmul.mubr.bf16.gmra.mxu0 %v390
    %v596 = vpop.f32.mrf.mxu0
    %v597 = vadd.f32 %v306, %v596
    %v598 = vpop.f32.mrf.mxu0
    %v599 = vpop.f32.mrf.mxu0
    %v600 = vadd.f32 %v311, %v599
    %v601 = vpop.f32.mrf.mxu0
    %602 = vmatprep.mubr.bf16.mxu0 0
    %603 = vmatmul.mubr.bf16.gmra.mxu0 %v393
    %v604 = vpop.f32.mrf.mxu0
    %v605 = vadd.f32 %v316, %v604
    %v606 = vpop.f32.mrf.mxu0
    %v607 = vpop.f32.mrf.mxu0
    %v608 = vadd.f32 %v321, %v607
    %v609 = vpop.f32.mrf.mxu0
    %610 = vmatprep.mubr.bf16.mxu0 0
    %611 = vmatmul.mubr.bf16.gmra.mxu0 %v396
    %v612 = vpop.f32.mrf.mxu0
    %v613 = vadd.f32 %v326, %v612
    %v614 = vpop.f32.mrf.mxu0
    %v615 = vpop.f32.mrf.mxu0
    %v616 = vadd.f32 %v331, %v615
    %v617 = vpop.f32.mrf.mxu0
    %618 = vdwg.mxu0
    %v619 = vmax.f32 %v444, 0.0
    %v620 = vmax.f32 %v446, 0.0
    %v621 = vmax.f32 %v557, 0.0
    %v622 = vmax.f32 %v448, 0.0
    %v623 = vmax.f32 %v450, 0.0
    %v624 = vmax.f32 %v560, 0.0
    %v625 = vmax.f32 %v454, 0.0
    %v626 = vmax.f32 %v456, 0.0
    %v627 = vmax.f32 %v565, 0.0
    %v628 = vmax.f32 %v458, 0.0
    %v629 = vmax.f32 %v460, 0.0
    %v630 = vmax.f32 %v568, 0.0
    %v631 = vmax.f32 %v464, 0.0
    %v632 = vmax.f32 %v466, 0.0
    %v633 = vmax.f32 %v573, 0.0
    %v634 = vmax.f32 %v468, 0.0
    %v635 = vmax.f32 %v470, 0.0
    %v636 = vmax.f32 %v576, 0.0
    %v637 = vmax.f32 %v474, 0.0
    %v638 = vmax.f32 %v476, 0.0
    %v639 = vmax.f32 %v581, 0.0
    %v640 = vmax.f32 %v478, 0.0
    %v641 = vmax.f32 %v480, 0.0
    %v642 = vmax.f32 %v584, 0.0
    %v643 = vmax.f32 %v484, 0.0
    %v644 = vmax.f32 %v486, 0.0
    %v645 = vmax.f32 %v589, 0.0
    %v646 = vmax.f32 %v488, 0.0
    %v647 = vmax.f32 %v490, 0.0
    %v648 = vmax.f32 %v592, 0.0
    %v649 = vmax.f32 %v494, 0.0
    %v650 = vmax.f32 %v496, 0.0
    %v651 = vmax.f32 %v597, 0.0
    %v652 = vmax.f32 %v498, 0.0
    %v653 = vmax.f32 %v500, 0.0
    %v654 = vmax.f32 %v600, 0.0
    %v655 = vmax.f32 %v504, 0.0
    %v656 = vmax.f32 %v506, 0.0
    %v657 = vmax.f32 %v605, 0.0
    %v658 = vmax.f32 %v508, 0.0
    %v659 = vmax.f32 %v510, 0.0
    %v660 = vmax.f32 %v608, 0.0
    %v661 = vmax.f32 %v514, 0.0
    %v662 = vmax.f32 %v516, 0.0
    %v663 = vmax.f32 %v613, 0.0
    %v664 = vmax.f32 %v518, 0.0
    %v665 = vmax.f32 %v520, 0.0
    %v666 = vmax.f32 %v616, 0.0
    %v668 = vlaneseq
    %v669 = vshrl.u32 %v668, 7
    %v670 = vsub.s32 0, %v669
    %v671 = vrot.slane %v31, %v670
    %v672 = vlaneseq
    %v673 = vshrl.u32 %v672, 7
    %v674 = vsub.s32 1, %v673
    %v675 = vrot.slane %v31, %v674
    %v676 = vlaneseq
    %v677 = vshrl.u32 %v676, 7
    %v678 = vsub.s32 2, %v677
    %v679 = vrot.slane %v31, %v678
    %v683 = vmul.f32 %v619, %v671
    %v684 = vmul.f32 %v620, %v675
    %v685 = vmul.f32 %v621, %v679
    %v686 = vmul.f32 %v622, %v671
    %v687 = vmul.f32 %v623, %v675
    %v688 = vmul.f32 %v624, %v679
    %v689 = vmul.f32 %v625, %v671
    %v690 = vmul.f32 %v626, %v675
    %v691 = vmul.f32 %v627, %v679
    %v692 = vmul.f32 %v628, %v671
    %v693 = vmul.f32 %v629, %v675
    %v694 = vmul.f32 %v630, %v679
    %v695 = vmul.f32 %v631, %v671
    %v696 = vmul.f32 %v632, %v675
    %v697 = vmul.f32 %v633, %v679
    %v698 = vmul.f32 %v634, %v671
    %v699 = vmul.f32 %v635, %v675
    %v700 = vmul.f32 %v636, %v679
    %v701 = vmul.f32 %v637, %v671
    %v702 = vmul.f32 %v638, %v675
    %v703 = vmul.f32 %v639, %v679
    %v704 = vmul.f32 %v640, %v671
    %v705 = vmul.f32 %v641, %v675
    %v706 = vmul.f32 %v642, %v679
    %v707 = vmul.f32 %v643, %v671
    %v708 = vmul.f32 %v644, %v675
    %v709 = vmul.f32 %v645, %v679
    %v710 = vmul.f32 %v646, %v671
    %v711 = vmul.f32 %v647, %v675
    %v712 = vmul.f32 %v648, %v679
    %v713 = vmul.f32 %v649, %v671
    %v714 = vmul.f32 %v650, %v675
    %v715 = vmul.f32 %v651, %v679
    %v716 = vmul.f32 %v652, %v671
    %v717 = vmul.f32 %v653, %v675
    %v718 = vmul.f32 %v654, %v679
    %v719 = vmul.f32 %v655, %v671
    %v720 = vmul.f32 %v656, %v675
    %v721 = vmul.f32 %v657, %v679
    %v722 = vmul.f32 %v658, %v671
    %v723 = vmul.f32 %v659, %v675
    %v724 = vmul.f32 %v660, %v679
    %v725 = vmul.f32 %v661, %v671
    %v726 = vmul.f32 %v662, %v675
    %v727 = vmul.f32 %v663, %v679
    %v728 = vmul.f32 %v664, %v671
    %v729 = vmul.f32 %v665, %v675
    %v730 = vmul.f32 %v666, %v679
    %v731 = vadd.f32 %v683, %v684
    %vm732 = vcmask 244736
    %v733 = vsel %vm732, %v685, 0.0
    %v734 = vadd.f32 %v731, %v733
    %735 = vadd.xlane.f32.xlu0 %v734
    %v736 = vpop.xlane.xlu0 %735
    %v737 = vadd.f32 %v686, %v687
    %v738 = vsel %vm732, %v688, 0.0
    %v739 = vadd.f32 %v737, %v738
    %740 = vadd.xlane.f32.xlu0 %v739
    %v741 = vpop.xlane.xlu0 %740
    %v742 = vadd.f32 %v689, %v690
    %v743 = vsel %vm732, %v691, 0.0
    %v744 = vadd.f32 %v742, %v743
    %745 = vadd.xlane.f32.xlu0 %v744
    %v746 = vpop.xlane.xlu0 %745
    %v747 = vadd.f32 %v692, %v693
    %v748 = vsel %vm732, %v694, 0.0
    %v749 = vadd.f32 %v747, %v748
    %750 = vadd.xlane.f32.xlu0 %v749
    %v751 = vpop.xlane.xlu0 %750
    %v752 = vadd.f32 %v695, %v696
    %v753 = vsel %vm732, %v697, 0.0
    %v754 = vadd.f32 %v752, %v753
    %755 = vadd.xlane.f32.xlu0 %v754
    %v756 = vpop.xlane.xlu0 %755
    %v757 = vadd.f32 %v698, %v699
    %v758 = vsel %vm732, %v700, 0.0
    %v759 = vadd.f32 %v757, %v758
    %760 = vadd.xlane.f32.xlu0 %v759
    %v761 = vpop.xlane.xlu0 %760
    %v762 = vadd.f32 %v701, %v702
    %v763 = vsel %vm732, %v703, 0.0
    %v764 = vadd.f32 %v762, %v763
    %765 = vadd.xlane.f32.xlu0 %v764
    %v766 = vpop.xlane.xlu0 %765
    %v767 = vadd.f32 %v704, %v705
    %v768 = vsel %vm732, %v706, 0.0
    %v769 = vadd.f32 %v767, %v768
    %770 = vadd.xlane.f32.xlu0 %v769
    %v771 = vpop.xlane.xlu0 %770
    %v772 = vadd.f32 %v707, %v708
    %v773 = vsel %vm732, %v709, 0.0
    %v774 = vadd.f32 %v772, %v773
    %775 = vadd.xlane.f32.xlu0 %v774
    %v776 = vpop.xlane.xlu0 %775
    %v777 = vadd.f32 %v710, %v711
    %v778 = vsel %vm732, %v712, 0.0
    %v779 = vadd.f32 %v777, %v778
    %780 = vadd.xlane.f32.xlu0 %v779
    %v781 = vpop.xlane.xlu0 %780
    %v782 = vadd.f32 %v713, %v714
    %v783 = vsel %vm732, %v715, 0.0
    %v784 = vadd.f32 %v782, %v783
    %785 = vadd.xlane.f32.xlu0 %v784
    %v786 = vpop.xlane.xlu0 %785
    %v787 = vadd.f32 %v716, %v717
    %v788 = vsel %vm732, %v718, 0.0
    %v789 = vadd.f32 %v787, %v788
    %790 = vadd.xlane.f32.xlu0 %v789
    %v791 = vpop.xlane.xlu0 %790
    %v792 = vadd.f32 %v719, %v720
    %v793 = vsel %vm732, %v721, 0.0
    %v794 = vadd.f32 %v792, %v793
    %795 = vadd.xlane.f32.xlu0 %v794
    %v796 = vpop.xlane.xlu0 %795
    %v797 = vadd.f32 %v722, %v723
    %v798 = vsel %vm732, %v724, 0.0
    %v799 = vadd.f32 %v797, %v798
    %800 = vadd.xlane.f32.xlu0 %v799
    %v801 = vpop.xlane.xlu0 %800
    %v802 = vadd.f32 %v725, %v726
    %v803 = vsel %vm732, %v727, 0.0
    %v804 = vadd.f32 %v802, %v803
    %805 = vadd.xlane.f32.xlu0 %v804
    %v806 = vpop.xlane.xlu0 %805
    %v807 = vadd.f32 %v728, %v729
    %v808 = vsel %vm732, %v730, 0.0
    %v809 = vadd.f32 %v807, %v808
    %810 = vadd.xlane.f32.xlu0 %v809
    %v811 = vpop.xlane.xlu0 %810
    %v812 = vmul.f32 %v32, %v736
    %v813 = vmul.f32 %v33, %v736
    %v814 = vmul.f32 %v34, %v741
    %v815 = vmul.f32 %v35, %v741
    %v816 = vmul.f32 %v36, %v746
    %v817 = vmul.f32 %v37, %v746
    %v818 = vmul.f32 %v38, %v751
    %v819 = vmul.f32 %v39, %v751
    %v820 = vmul.f32 %v40, %v756
    %v821 = vmul.f32 %v41, %v756
    %v822 = vmul.f32 %v42, %v761
    %v823 = vmul.f32 %v43, %v761
    %v824 = vmul.f32 %v44, %v766
    %v825 = vmul.f32 %v45, %v766
    %v826 = vmul.f32 %v46, %v771
    %v827 = vmul.f32 %v47, %v771
    %v828 = vmul.f32 %v48, %v776
    %v829 = vmul.f32 %v49, %v776
    %v830 = vmul.f32 %v50, %v781
    %v831 = vmul.f32 %v51, %v781
    %v832 = vmul.f32 %v52, %v786
    %v833 = vmul.f32 %v53, %v786
    %v834 = vmul.f32 %v54, %v791
    %v835 = vmul.f32 %v55, %v791
    %v836 = vmul.f32 %v56, %v796
    %v837 = vmul.f32 %v57, %v796
    %v838 = vmul.f32 %v58, %v801
    %v839 = vmul.f32 %v59, %v801
    %v840 = vmul.f32 %v60, %v806
    %v841 = vmul.f32 %v61, %v806
    %v842 = vmul.f32 %v62, %v811
    %v843 = vmul.f32 %v63, %v811
    %v844 = vadd.f32 %v812, %v814
    %v845 = vadd.f32 %v844, %v816
    %v846 = vadd.f32 %v845, %v818
    %v847 = vadd.f32 %v846, %v820
    %v848 = vadd.f32 %v847, %v822
    %v849 = vadd.f32 %v848, %v824
    %v850 = vadd.f32 %v849, %v826
    %v851 = vadd.f32 %v850, %v828
    %v852 = vadd.f32 %v851, %v830
    %v853 = vadd.f32 %v852, %v832
    %v854 = vadd.f32 %v853, %v834
    %v855 = vadd.f32 %v854, %v836
    %v856 = vadd.f32 %v855, %v838
    %v857 = vadd.f32 %v856, %v840
    %v858 = vadd.f32 %v857, %v842
    %v859 = vrot.slane %v858, 4
    %v860 = vadd.f32 %v858, %v859
    %v861 = vrot.slane %v860, 2
    %v862 = vadd.f32 %v860, %v861
    %v863 = vrot.slane %v862, 1
    %v864 = vadd.f32 %v862, %v863
    %v865 = vadd.f32 %v813, %v815
    %v866 = vadd.f32 %v865, %v817
    %v867 = vadd.f32 %v866, %v819
    %v868 = vadd.f32 %v867, %v821
    %v869 = vadd.f32 %v868, %v823
    %v870 = vadd.f32 %v869, %v825
    %v871 = vadd.f32 %v870, %v827
    %v872 = vadd.f32 %v871, %v829
    %v873 = vadd.f32 %v872, %v831
    %v874 = vadd.f32 %v873, %v833
    %v875 = vadd.f32 %v874, %v835
    %v876 = vadd.f32 %v875, %v837
    %v877 = vadd.f32 %v876, %v839
    %v878 = vadd.f32 %v877, %v841
    %v879 = vadd.f32 %v878, %v843
    %v880 = vrot.slane %v879, 4
    %v881 = vadd.f32 %v879, %v880
    %v882 = vrot.slane %v881, 2
    %v883 = vadd.f32 %v881, %v882
    %v884 = vrot.slane %v883, 1
    %v885 = vadd.f32 %v883, %v884
    %s886 = scalar_lea.vmem %s0, 6
    %v887 = vld [vmem:[%s886] sm:$0x3f]
    %v888 = vunpack.c.l.bf16 %v887
    %v889 = vunpack.c.h.bf16 %v887
    %v892 = vcombine.high %v888, %v888
    %v894 = vrot.slane %v888, 5
    %v895 = vrot.slane %v892, 5
    %v896 = vrot.slane %v889, 5
    %897 = vrot.lane.b32.xlu0 %v894, 127
    %v898 = vpop.permute.xlu0 %897
    %899 = vrot.lane.b32.xlu0 %v895, 127
    %v900 = vpop.permute.xlu0 %899
    %901 = vrot.lane.b32.xlu0 %v896, 127
    %v902 = vpop.permute.xlu0 %901
    %v903 = vsel %vm80, %v898, %v900
    %v904 = vsel %vm80, %v900, %v902
    %v908 = vrot.slane %v888, 2
    %v909 = vrot.slane %v892, 2
    %v910 = vrot.slane %v889, 2
    %911 = vrot.lane.b32.xlu0 %v908, 126
    %v912 = vpop.permute.xlu0 %911
    %913 = vrot.lane.b32.xlu0 %v909, 126
    %v914 = vpop.permute.xlu0 %913
    %915 = vrot.lane.b32.xlu0 %v910, 126
    %v916 = vpop.permute.xlu0 %915
    %v917 = vsel %vm95, %v912, %v914
    %v918 = vsel %vm95, %v914, %v916
    %v922 = vrot.slane %v888, 7
    %v923 = vrot.slane %v892, 7
    %v924 = vrot.slane %v889, 7
    %925 = vrot.lane.b32.xlu0 %v922, 110
    %v926 = vpop.permute.xlu0 %925
    %927 = vrot.lane.b32.xlu0 %v923, 110
    %v928 = vpop.permute.xlu0 %927
    %929 = vrot.lane.b32.xlu0 %v924, 110
    %v930 = vpop.permute.xlu0 %929
    %v931 = vsel %vm110, %v926, %v928
    %v932 = vsel %vm110, %v928, %v930
    %v936 = vcombine.low %v888, %v888
    %v937 = vcombine.low %v889, %v889
    %938 = vrot.lane.b32.xlu0 %v936, 109
    %v939 = vpop.permute.xlu0 %938
    %940 = vrot.lane.b32.xlu0 %v888, 109
    %v941 = vpop.permute.xlu0 %940
    %942 = vrot.lane.b32.xlu0 %v937, 109
    %v943 = vpop.permute.xlu0 %942
    %v944 = vsel %vm124, %v939, %v941
    %v945 = vsel %vm124, %v941, %v943
    %v949 = vrot.slane %v888, 1
    %v950 = vrot.slane %v892, 1
    %v951 = vrot.slane %v889, 1
    %952 = vrot.lane.b32.xlu0 %v949, 108
    %v953 = vpop.permute.xlu0 %952
    %954 = vrot.lane.b32.xlu0 %v950, 108
    %v955 = vpop.permute.xlu0 %954
    %956 = vrot.lane.b32.xlu0 %v951, 108
    %v957 = vpop.permute.xlu0 %956
    %v958 = vsel %vm139, %v953, %v955
    %v959 = vsel %vm139, %v955, %v957
    %v963 = vrot.slane %v888, 6
    %v964 = vrot.slane %v892, 6
    %v965 = vrot.slane %v889, 6
    %966 = vrot.lane.b32.xlu0 %v963, 92
    %v967 = vpop.permute.xlu0 %966
    %968 = vrot.lane.b32.xlu0 %v964, 92
    %v969 = vpop.permute.xlu0 %968
    %970 = vrot.lane.b32.xlu0 %v965, 92
    %v971 = vpop.permute.xlu0 %970
    %v972 = vsel %vm154, %v967, %v969
    %v973 = vsel %vm154, %v969, %v971
    %v977 = vrot.slane %v888, 3
    %v978 = vrot.slane %v892, 3
    %v979 = vrot.slane %v889, 3
    %980 = vrot.lane.b32.xlu0 %v977, 91
    %v981 = vpop.permute.xlu0 %980
    %982 = vrot.lane.b32.xlu0 %v978, 91
    %v983 = vpop.permute.xlu0 %982
    %984 = vrot.lane.b32.xlu0 %v979, 91
    %v985 = vpop.permute.xlu0 %984
    %v986 = vsel %vm169, %v981, %v983
    %v987 = vsel %vm169, %v983, %v985
    %991 = vrot.lane.b32.xlu0 %v888, 90
    %v992 = vpop.permute.xlu0 %991
    %993 = vrot.lane.b32.xlu0 %v892, 90
    %v994 = vpop.permute.xlu0 %993
    %995 = vrot.lane.b32.xlu0 %v889, 90
    %v996 = vpop.permute.xlu0 %995
    %v997 = vsel %vm181, %v992, %v994
    %v998 = vsel %vm181, %v994, %v996
    %v1002 = vsel %vm187, %v888, %v903
    %v1003 = vsel %vm187, %v892, %v904
    %v1004 = vsel %vm187, %v889, %v902
    %v1005 = vsel %vm191, %v1002, %v917
    %v1006 = vsel %vm191, %v1003, %v918
    %v1007 = vsel %vm191, %v1004, %v916
    %v1008 = vsel %vm195, %v917, %v931
    %v1009 = vsel %vm195, %v918, %v932
    %v1010 = vsel %vm195, %v916, %v930
    %v1011 = vsel %vm199, %v1008, %v944
    %v1012 = vsel %vm199, %v1009, %v945
    %v1013 = vsel %vm199, %v1010, %v943
    %v1014 = vsel %vm203, %v1011, %v958
    %v1015 = vsel %vm203, %v1012, %v959
    %v1016 = vsel %vm203, %v1013, %v957
    %v1017 = vsel %vm207, %v958, %v972
    %v1018 = vsel %vm207, %v959, %v973
    %v1019 = vsel %vm207, %v957, %v971
    %v1020 = vsel %vm211, %v1017, %v986
    %v1021 = vsel %vm211, %v1018, %v987
    %v1022 = vsel %vm211, %v1019, %v985
    %v1023 = vpack.c.bf16 %v1014, %v1005
    %v1024 = vpack.c.bf16 %v1015, %v1006
    %v1025 = vpack.c.bf16 %v1016, %v1007
    %v1026 = vpack.c.bf16 %v997, %v1020
    %v1027 = vpack.c.bf16 %v998, %v1021
    %v1028 = vpack.c.bf16 %v996, %v1022
    %v1030 = vand.u32 %v1026, %v399
    %v1033 = vand.u32 %v1027, %v399
    %v1036 = vand.u32 %v1028, %v399
    %1038 = vmatprep.subr.bf16.mxu0 0
    %1039 = vmatpush1.bf16.msra.mxu0 0
    %1040 = vmatprep.subr.bf16.mxu0 0
    %1041 = vmatpush1.bf16.msra.mxu0 0
    %1042 = vmatprep.subr.bf16.mxu0 0
    %1043 = vmatpush1.bf16.msra.mxu0 0
    %1044 = vmatprep.subr.bf16.mxu0 0
    %1045 = vmatpush1.bf16.msra.mxu0 0
    %1046 = vmatprep.subr.bf16.mxu0 0
    %1047 = vmatpush1.bf16.msra.mxu0 0
    %1048 = vmatprep.subr.bf16.mxu0 0
    %1049 = vmatpush1.bf16.msra.mxu0 0
    %1050 = vmatprep.subr.bf16.mxu0 %v1033
    %1051 = vmatpush1.bf16.msra.mxu0 %v1030
    %1052 = vmatprep.subr.bf16.mxu0 %v1024
    %1053 = vmatpush1.bf16.msra.mxu0 %v1023
    %1054 = vmatprep.subr.bf16.mxu0 0
    %1055 = vmatpush2.bf16.msra.mxu0 0
    %1056 = vmatprep.subr.bf16.mxu0 0
    %1057 = vmatpush2.bf16.msra.mxu0 0
    %1058 = vmatprep.subr.bf16.mxu0 0
    %1059 = vmatpush2.bf16.msra.mxu0 0
    %1060 = vmatprep.subr.bf16.mxu0 0
    %1061 = vmatpush2.bf16.msra.mxu0 0
    %1062 = vmatprep.subr.bf16.mxu0 0
    %1063 = vmatpush2.bf16.msra.mxu0 0
    %1064 = vmatprep.subr.bf16.mxu0 0
    %1065 = vmatpush2.bf16.msra.mxu0 0
    %1066 = vmatprep.subr.bf16.mxu0 0
    %1067 = vmatpush2.bf16.msra.mxu0 0
    %1068 = vmatprep.subr.bf16.mxu0 0
    %1069 = vmatpush2.bf16.msra.mxu0 0
    %1070 = vmatprep.mubr.bf16.mxu0 0
    %1071 = vmatmul.mubr.bf16.gmra.mxu0 %v375
    %v1072 = vpop.f32.mrf.mxu0
    %v1073 = vadd.f32 %v256, %v1072
    %v1074 = vpop.f32.mrf.mxu0
    %v1075 = vadd.f32 %v256, %v1074
    %v1076 = vpop.f32.mrf.mxu0
    %v1077 = vadd.f32 %v261, %v1076
    %v1078 = vpop.f32.mrf.mxu0
    %v1079 = vadd.f32 %v261, %v1078
    %1080 = vmatprep.mubr.bf16.mxu0 0
    %1081 = vmatmul.mubr.bf16.gmra.mxu0 %v378
    %v1082 = vpop.f32.mrf.mxu0
    %v1083 = vadd.f32 %v266, %v1082
    %v1084 = vpop.f32.mrf.mxu0
    %v1085 = vadd.f32 %v266, %v1084
    %v1086 = vpop.f32.mrf.mxu0
    %v1087 = vadd.f32 %v271, %v1086
    %v1088 = vpop.f32.mrf.mxu0
    %v1089 = vadd.f32 %v271, %v1088
    %1090 = vmatprep.mubr.bf16.mxu0 0
    %1091 = vmatmul.mubr.bf16.gmra.mxu0 %v381
    %v1092 = vpop.f32.mrf.mxu0
    %v1093 = vadd.f32 %v276, %v1092
    %v1094 = vpop.f32.mrf.mxu0
    %v1095 = vadd.f32 %v276, %v1094
    %v1096 = vpop.f32.mrf.mxu0
    %v1097 = vadd.f32 %v281, %v1096
    %v1098 = vpop.f32.mrf.mxu0
    %v1099 = vadd.f32 %v281, %v1098
    %1100 = vmatprep.mubr.bf16.mxu0 0
    %1101 = vmatmul.mubr.bf16.gmra.mxu0 %v384
    %v1102 = vpop.f32.mrf.mxu0
    %v1103 = vadd.f32 %v286, %v1102
    %v1104 = vpop.f32.mrf.mxu0
    %v1105 = vadd.f32 %v286, %v1104
    %v1106 = vpop.f32.mrf.mxu0
    %v1107 = vadd.f32 %v291, %v1106
    %v1108 = vpop.f32.mrf.mxu0
    %v1109 = vadd.f32 %v291, %v1108
    %1110 = vmatprep.mubr.bf16.mxu0 0
    %1111 = vmatmul.mubr.bf16.gmra.mxu0 %v387
    %v1112 = vpop.f32.mrf.mxu0
    %v1113 = vadd.f32 %v296, %v1112
    %v1114 = vpop.f32.mrf.mxu0
    %v1115 = vadd.f32 %v296, %v1114
    %v1116 = vpop.f32.mrf.mxu0
    %v1117 = vadd.f32 %v301, %v1116
    %v1118 = vpop.f32.mrf.mxu0
    %v1119 = vadd.f32 %v301, %v1118
    %1120 = vmatprep.mubr.bf16.mxu0 0
    %1121 = vmatmul.mubr.bf16.gmra.mxu0 %v390
    %v1122 = vpop.f32.mrf.mxu0
    %v1123 = vadd.f32 %v306, %v1122
    %v1124 = vpop.f32.mrf.mxu0
    %v1125 = vadd.f32 %v306, %v1124
    %v1126 = vpop.f32.mrf.mxu0
    %v1127 = vadd.f32 %v311, %v1126
    %v1128 = vpop.f32.mrf.mxu0
    %v1129 = vadd.f32 %v311, %v1128
    %1130 = vmatprep.mubr.bf16.mxu0 0
    %1131 = vmatmul.mubr.bf16.gmra.mxu0 %v393
    %v1132 = vpop.f32.mrf.mxu0
    %v1133 = vadd.f32 %v316, %v1132
    %v1134 = vpop.f32.mrf.mxu0
    %v1135 = vadd.f32 %v316, %v1134
    %v1136 = vpop.f32.mrf.mxu0
    %v1137 = vadd.f32 %v321, %v1136
    %v1138 = vpop.f32.mrf.mxu0
    %v1139 = vadd.f32 %v321, %v1138
    %1140 = vmatprep.mubr.bf16.mxu0 0
    %1141 = vmatmul.mubr.bf16.gmra.mxu0 %v396
    %v1142 = vpop.f32.mrf.mxu0
    %v1143 = vadd.f32 %v326, %v1142
    %v1144 = vpop.f32.mrf.mxu0
    %v1145 = vadd.f32 %v326, %v1144
    %v1146 = vpop.f32.mrf.mxu0
    %v1147 = vadd.f32 %v331, %v1146
    %v1148 = vpop.f32.mrf.mxu0
    %v1149 = vadd.f32 %v331, %v1148
    %1150 = vdwg.mxu0
    %1151 = vmatprep.subr.bf16.mxu0 0
    %1152 = vmatpush1.bf16.msra.mxu0 0
    %1153 = vmatprep.subr.bf16.mxu0 0
    %1154 = vmatpush1.bf16.msra.mxu0 0
    %1155 = vmatprep.subr.bf16.mxu0 0
    %1156 = vmatpush1.bf16.msra.mxu0 0
    %1157 = vmatprep.subr.bf16.mxu0 0
    %1158 = vmatpush1.bf16.msra.mxu0 0
    %1159 = vmatprep.subr.bf16.mxu0 0
    %1160 = vmatpush1.bf16.msra.mxu0 0
    %1161 = vmatprep.subr.bf16.mxu0 0
    %1162 = vmatpush1.bf16.msra.mxu0 0
    %1163 = vmatprep.subr.bf16.mxu0 0
    %1164 = vmatpush1.bf16.msra.mxu0 %v1036
    %1165 = vmatprep.subr.bf16.mxu0 0
    %1166 = vmatpush1.bf16.msra.mxu0 %v1025
    %1167 = vmatprep.subr.bf16.mxu0 0
    %1168 = vmatpush2.bf16.msra.mxu0 0
    %1169 = vmatprep.subr.bf16.mxu0 0
    %1170 = vmatpush2.bf16.msra.mxu0 0
    %1171 = vmatprep.subr.bf16.mxu0 0
    %1172 = vmatpush2.bf16.msra.mxu0 0
    %1173 = vmatprep.subr.bf16.mxu0 0
    %1174 = vmatpush2.bf16.msra.mxu0 0
    %1175 = vmatprep.subr.bf16.mxu0 0
    %1176 = vmatpush2.bf16.msra.mxu0 0
    %1177 = vmatprep.subr.bf16.mxu0 0
    %1178 = vmatpush2.bf16.msra.mxu0 0
    %1179 = vmatprep.subr.bf16.mxu0 0
    %1180 = vmatpush2.bf16.msra.mxu0 0
    %1181 = vmatprep.subr.bf16.mxu0 0
    %1182 = vmatpush2.bf16.msra.mxu0 0
    %1183 = vmatprep.mubr.bf16.mxu0 0
    %1184 = vmatmul.mubr.bf16.gmra.mxu0 %v375
    %v1185 = vpop.f32.mrf.mxu0
    %v1186 = vadd.f32 %v256, %v1185
    %v1187 = vpop.f32.mrf.mxu0
    %v1188 = vpop.f32.mrf.mxu0
    %v1189 = vadd.f32 %v261, %v1188
    %v1190 = vpop.f32.mrf.mxu0
    %1191 = vmatprep.mubr.bf16.mxu0 0
    %1192 = vmatmul.mubr.bf16.gmra.mxu0 %v378
    %v1193 = vpop.f32.mrf.mxu0
    %v1194 = vadd.f32 %v266, %v1193
    %v1195 = vpop.f32.mrf.mxu0
    %v1196 = vpop.f32.mrf.mxu0
    %v1197 = vadd.f32 %v271, %v1196
    %v1198 = vpop.f32.mrf.mxu0
    %1199 = vmatprep.mubr.bf16.mxu0 0
    %1200 = vmatmul.mubr.bf16.gmra.mxu0 %v381
    %v1201 = vpop.f32.mrf.mxu0
    %v1202 = vadd.f32 %v276, %v1201
    %v1203 = vpop.f32.mrf.mxu0
    %v1204 = vpop.f32.mrf.mxu0
    %v1205 = vadd.f32 %v281, %v1204
    %v1206 = vpop.f32.mrf.mxu0
    %1207 = vmatprep.mubr.bf16.mxu0 0
    %1208 = vmatmul.mubr.bf16.gmra.mxu0 %v384
    %v1209 = vpop.f32.mrf.mxu0
    %v1210 = vadd.f32 %v286, %v1209
    %v1211 = vpop.f32.mrf.mxu0
    %v1212 = vpop.f32.mrf.mxu0
    %v1213 = vadd.f32 %v291, %v1212
    %v1214 = vpop.f32.mrf.mxu0
    %1215 = vmatprep.mubr.bf16.mxu0 0
    %1216 = vmatmul.mubr.bf16.gmra.mxu0 %v387
    %v1217 = vpop.f32.mrf.mxu0
    %v1218 = vadd.f32 %v296, %v1217
    %v1219 = vpop.f32.mrf.mxu0
    %v1220 = vpop.f32.mrf.mxu0
    %v1221 = vadd.f32 %v301, %v1220
    %v1222 = vpop.f32.mrf.mxu0
    %1223 = vmatprep.mubr.bf16.mxu0 0
    %1224 = vmatmul.mubr.bf16.gmra.mxu0 %v390
    %v1225 = vpop.f32.mrf.mxu0
    %v1226 = vadd.f32 %v306, %v1225
    %v1227 = vpop.f32.mrf.mxu0
    %v1228 = vpop.f32.mrf.mxu0
    %v1229 = vadd.f32 %v311, %v1228
    %v1230 = vpop.f32.mrf.mxu0
    %1231 = vmatprep.mubr.bf16.mxu0 0
    %1232 = vmatmul.mubr.bf16.gmra.mxu0 %v393
    %v1233 = vpop.f32.mrf.mxu0
    %v1234 = vadd.f32 %v316, %v1233
    %v1235 = vpop.f32.mrf.mxu0
    %v1236 = vpop.f32.mrf.mxu0
    %v1237 = vadd.f32 %v321, %v1236
    %v1238 = vpop.f32.mrf.mxu0
    %1239 = vmatprep.mubr.bf16.mxu0 0
    %1240 = vmatmul.mubr.bf16.gmra.mxu0 %v396
    %v1241 = vpop.f32.mrf.mxu0
    %v1242 = vadd.f32 %v326, %v1241
    %v1243 = vpop.f32.mrf.mxu0
    %v1244 = vpop.f32.mrf.mxu0
    %v1245 = vadd.f32 %v331, %v1244
    %v1246 = vpop.f32.mrf.mxu0
    %1247 = vdwg.mxu0
    %v1248 = vmax.f32 %v1073, 0.0
    %v1249 = vmax.f32 %v1075, 0.0
    %v1250 = vmax.f32 %v1186, 0.0
    %v1251 = vmax.f32 %v1077, 0.0
    %v1252 = vmax.f32 %v1079, 0.0
    %v1253 = vmax.f32 %v1189, 0.0
    %v1254 = vmax.f32 %v1083, 0.0
    %v1255 = vmax.f32 %v1085, 0.0
    %v1256 = vmax.f32 %v1194, 0.0
    %v1257 = vmax.f32 %v1087, 0.0
    %v1258 = vmax.f32 %v1089, 0.0
    %v1259 = vmax.f32 %v1197, 0.0
    %v1260 = vmax.f32 %v1093, 0.0
    %v1261 = vmax.f32 %v1095, 0.0
    %v1262 = vmax.f32 %v1202, 0.0
    %v1263 = vmax.f32 %v1097, 0.0
    %v1264 = vmax.f32 %v1099, 0.0
    %v1265 = vmax.f32 %v1205, 0.0
    %v1266 = vmax.f32 %v1103, 0.0
    %v1267 = vmax.f32 %v1105, 0.0
    %v1268 = vmax.f32 %v1210, 0.0
    %v1269 = vmax.f32 %v1107, 0.0
    %v1270 = vmax.f32 %v1109, 0.0
    %v1271 = vmax.f32 %v1213, 0.0
    %v1272 = vmax.f32 %v1113, 0.0
    %v1273 = vmax.f32 %v1115, 0.0
    %v1274 = vmax.f32 %v1218, 0.0
    %v1275 = vmax.f32 %v1117, 0.0
    %v1276 = vmax.f32 %v1119, 0.0
    %v1277 = vmax.f32 %v1221, 0.0
    %v1278 = vmax.f32 %v1123, 0.0
    %v1279 = vmax.f32 %v1125, 0.0
    %v1280 = vmax.f32 %v1226, 0.0
    %v1281 = vmax.f32 %v1127, 0.0
    %v1282 = vmax.f32 %v1129, 0.0
    %v1283 = vmax.f32 %v1229, 0.0
    %v1284 = vmax.f32 %v1133, 0.0
    %v1285 = vmax.f32 %v1135, 0.0
    %v1286 = vmax.f32 %v1234, 0.0
    %v1287 = vmax.f32 %v1137, 0.0
    %v1288 = vmax.f32 %v1139, 0.0
    %v1289 = vmax.f32 %v1237, 0.0
    %v1290 = vmax.f32 %v1143, 0.0
    %v1291 = vmax.f32 %v1145, 0.0
    %v1292 = vmax.f32 %v1242, 0.0
    %v1293 = vmax.f32 %v1147, 0.0
    %v1294 = vmax.f32 %v1149, 0.0
    %v1295 = vmax.f32 %v1245, 0.0
    %v1296 = vmul.f32 %v1248, %v671
    %v1297 = vmul.f32 %v1249, %v675
    %v1298 = vmul.f32 %v1250, %v679
    %v1299 = vmul.f32 %v1251, %v671
    %v1300 = vmul.f32 %v1252, %v675
    %v1301 = vmul.f32 %v1253, %v679
    %v1302 = vmul.f32 %v1254, %v671
    %v1303 = vmul.f32 %v1255, %v675
    %v1304 = vmul.f32 %v1256, %v679
    %v1305 = vmul.f32 %v1257, %v671
    %v1306 = vmul.f32 %v1258, %v675
    %v1307 = vmul.f32 %v1259, %v679
    %v1308 = vmul.f32 %v1260, %v671
    %v1309 = vmul.f32 %v1261, %v675
    %v1310 = vmul.f32 %v1262, %v679
    %v1311 = vmul.f32 %v1263, %v671
    %v1312 = vmul.f32 %v1264, %v675
    %v1313 = vmul.f32 %v1265, %v679
    %v1314 = vmul.f32 %v1266, %v671
    %v1315 = vmul.f32 %v1267, %v675
    %v1316 = vmul.f32 %v1268, %v679
    %v1317 = vmul.f32 %v1269, %v671
    %v1318 = vmul.f32 %v1270, %v675
    %v1319 = vmul.f32 %v1271, %v679
    %v1320 = vmul.f32 %v1272, %v671
    %v1321 = vmul.f32 %v1273, %v675
    %v1322 = vmul.f32 %v1274, %v679
    %v1323 = vmul.f32 %v1275, %v671
    %v1324 = vmul.f32 %v1276, %v675
    %v1325 = vmul.f32 %v1277, %v679
    %v1326 = vmul.f32 %v1278, %v671
    %v1327 = vmul.f32 %v1279, %v675
    %v1328 = vmul.f32 %v1280, %v679
    %v1329 = vmul.f32 %v1281, %v671
    %v1330 = vmul.f32 %v1282, %v675
    %v1331 = vmul.f32 %v1283, %v679
    %v1332 = vmul.f32 %v1284, %v671
    %v1333 = vmul.f32 %v1285, %v675
    %v1334 = vmul.f32 %v1286, %v679
    %v1335 = vmul.f32 %v1287, %v671
    %v1336 = vmul.f32 %v1288, %v675
    %v1337 = vmul.f32 %v1289, %v679
    %v1338 = vmul.f32 %v1290, %v671
    %v1339 = vmul.f32 %v1291, %v675
    %v1340 = vmul.f32 %v1292, %v679
    %v1341 = vmul.f32 %v1293, %v671
    %v1342 = vmul.f32 %v1294, %v675
    %v1343 = vmul.f32 %v1295, %v679
    %v1344 = vadd.f32 %v1296, %v1297
    %v1345 = vsel %vm732, %v1298, 0.0
    %v1346 = vadd.f32 %v1344, %v1345
    %1347 = vadd.xlane.f32.xlu0 %v1346
    %v1348 = vpop.xlane.xlu0 %1347
    %v1349 = vadd.f32 %v1299, %v1300
    %v1350 = vsel %vm732, %v1301, 0.0
    %v1351 = vadd.f32 %v1349, %v1350
    %1352 = vadd.xlane.f32.xlu0 %v1351
    %v1353 = vpop.xlane.xlu0 %1352
    %v1354 = vadd.f32 %v1302, %v1303
    %v1355 = vsel %vm732, %v1304, 0.0
    %v1356 = vadd.f32 %v1354, %v1355
    %1357 = vadd.xlane.f32.xlu0 %v1356
    %v1358 = vpop.xlane.xlu0 %1357
    %v1359 = vadd.f32 %v1305, %v1306
    %v1360 = vsel %vm732, %v1307, 0.0
    %v1361 = vadd.f32 %v1359, %v1360
    %1362 = vadd.xlane.f32.xlu0 %v1361
    %v1363 = vpop.xlane.xlu0 %1362
    %v1364 = vadd.f32 %v1308, %v1309
    %v1365 = vsel %vm732, %v1310, 0.0
    %v1366 = vadd.f32 %v1364, %v1365
    %1367 = vadd.xlane.f32.xlu0 %v1366
    %v1368 = vpop.xlane.xlu0 %1367
    %v1369 = vadd.f32 %v1311, %v1312
    %v1370 = vsel %vm732, %v1313, 0.0
    %v1371 = vadd.f32 %v1369, %v1370
    %1372 = vadd.xlane.f32.xlu0 %v1371
    %v1373 = vpop.xlane.xlu0 %1372
    %v1374 = vadd.f32 %v1314, %v1315
    %v1375 = vsel %vm732, %v1316, 0.0
    %v1376 = vadd.f32 %v1374, %v1375
    %1377 = vadd.xlane.f32.xlu0 %v1376
    %v1378 = vpop.xlane.xlu0 %1377
    %v1379 = vadd.f32 %v1317, %v1318
    %v1380 = vsel %vm732, %v1319, 0.0
    %v1381 = vadd.f32 %v1379, %v1380
    %1382 = vadd.xlane.f32.xlu0 %v1381
    %v1383 = vpop.xlane.xlu0 %1382
    %v1384 = vadd.f32 %v1320, %v1321
    %v1385 = vsel %vm732, %v1322, 0.0
    %v1386 = vadd.f32 %v1384, %v1385
    %1387 = vadd.xlane.f32.xlu0 %v1386
    %v1388 = vpop.xlane.xlu0 %1387
    %v1389 = vadd.f32 %v1323, %v1324
    %v1390 = vsel %vm732, %v1325, 0.0
    %v1391 = vadd.f32 %v1389, %v1390
    %1392 = vadd.xlane.f32.xlu0 %v1391
    %v1393 = vpop.xlane.xlu0 %1392
    %v1394 = vadd.f32 %v1326, %v1327
    %v1395 = vsel %vm732, %v1328, 0.0
    %v1396 = vadd.f32 %v1394, %v1395
    %1397 = vadd.xlane.f32.xlu0 %v1396
    %v1398 = vpop.xlane.xlu0 %1397
    %v1399 = vadd.f32 %v1329, %v1330
    %v1400 = vsel %vm732, %v1331, 0.0
    %v1401 = vadd.f32 %v1399, %v1400
    %1402 = vadd.xlane.f32.xlu0 %v1401
    %v1403 = vpop.xlane.xlu0 %1402
    %v1404 = vadd.f32 %v1332, %v1333
    %v1405 = vsel %vm732, %v1334, 0.0
    %v1406 = vadd.f32 %v1404, %v1405
    %1407 = vadd.xlane.f32.xlu0 %v1406
    %v1408 = vpop.xlane.xlu0 %1407
    %v1409 = vadd.f32 %v1335, %v1336
    %v1410 = vsel %vm732, %v1337, 0.0
    %v1411 = vadd.f32 %v1409, %v1410
    %1412 = vadd.xlane.f32.xlu0 %v1411
    %v1413 = vpop.xlane.xlu0 %1412
    %v1414 = vadd.f32 %v1338, %v1339
    %v1415 = vsel %vm732, %v1340, 0.0
    %v1416 = vadd.f32 %v1414, %v1415
    %1417 = vadd.xlane.f32.xlu0 %v1416
    %v1418 = vpop.xlane.xlu0 %1417
    %v1419 = vadd.f32 %v1341, %v1342
    %v1420 = vsel %vm732, %v1343, 0.0
    %v1421 = vadd.f32 %v1419, %v1420
    %1422 = vadd.xlane.f32.xlu0 %v1421
    %v1423 = vpop.xlane.xlu0 %1422
    %v1424 = vmul.f32 %v32, %v1348
    %v1425 = vmul.f32 %v33, %v1348
    %v1426 = vmul.f32 %v34, %v1353
    %v1427 = vmul.f32 %v35, %v1353
    %v1428 = vmul.f32 %v36, %v1358
    %v1429 = vmul.f32 %v37, %v1358
    %v1430 = vmul.f32 %v38, %v1363
    %v1431 = vmul.f32 %v39, %v1363
    %v1432 = vmul.f32 %v40, %v1368
    %v1433 = vmul.f32 %v41, %v1368
    %v1434 = vmul.f32 %v42, %v1373
    %v1435 = vmul.f32 %v43, %v1373
    %v1436 = vmul.f32 %v44, %v1378
    %v1437 = vmul.f32 %v45, %v1378
    %v1438 = vmul.f32 %v46, %v1383
    %v1439 = vmul.f32 %v47, %v1383
    %v1440 = vmul.f32 %v48, %v1388
    %v1441 = vmul.f32 %v49, %v1388
    %v1442 = vmul.f32 %v50, %v1393
    %v1443 = vmul.f32 %v51, %v1393
    %v1444 = vmul.f32 %v52, %v1398
    %v1445 = vmul.f32 %v53, %v1398
    %v1446 = vmul.f32 %v54, %v1403
    %v1447 = vmul.f32 %v55, %v1403
    %v1448 = vmul.f32 %v56, %v1408
    %v1449 = vmul.f32 %v57, %v1408
    %v1450 = vmul.f32 %v58, %v1413
    %v1451 = vmul.f32 %v59, %v1413
    %v1452 = vmul.f32 %v60, %v1418
    %v1453 = vmul.f32 %v61, %v1418
    %v1454 = vmul.f32 %v62, %v1423
    %v1455 = vmul.f32 %v63, %v1423
    %v1456 = vadd.f32 %v1424, %v1426
    %v1457 = vadd.f32 %v1456, %v1428
    %v1458 = vadd.f32 %v1457, %v1430
    %v1459 = vadd.f32 %v1458, %v1432
    %v1460 = vadd.f32 %v1459, %v1434
    %v1461 = vadd.f32 %v1460, %v1436
    %v1462 = vadd.f32 %v1461, %v1438
    %v1463 = vadd.f32 %v1462, %v1440
    %v1464 = vadd.f32 %v1463, %v1442
    %v1465 = vadd.f32 %v1464, %v1444
    %v1466 = vadd.f32 %v1465, %v1446
    %v1467 = vadd.f32 %v1466, %v1448
    %v1468 = vadd.f32 %v1467, %v1450
    %v1469 = vadd.f32 %v1468, %v1452
    %v1470 = vadd.f32 %v1469, %v1454
    %v1471 = vrot.slane %v1470, 4
    %v1472 = vadd.f32 %v1470, %v1471
    %v1473 = vrot.slane %v1472, 2
    %v1474 = vadd.f32 %v1472, %v1473
    %v1475 = vrot.slane %v1474, 1
    %v1476 = vadd.f32 %v1474, %v1475
    %v1477 = vadd.f32 %v1425, %v1427
    %v1478 = vadd.f32 %v1477, %v1429
    %v1479 = vadd.f32 %v1478, %v1431
    %v1480 = vadd.f32 %v1479, %v1433
    %v1481 = vadd.f32 %v1480, %v1435
    %v1482 = vadd.f32 %v1481, %v1437
    %v1483 = vadd.f32 %v1482, %v1439
    %v1484 = vadd.f32 %v1483, %v1441
    %v1485 = vadd.f32 %v1484, %v1443
    %v1486 = vadd.f32 %v1485, %v1445
    %v1487 = vadd.f32 %v1486, %v1447
    %v1488 = vadd.f32 %v1487, %v1449
    %v1489 = vadd.f32 %v1488, %v1451
    %v1490 = vadd.f32 %v1489, %v1453
    %v1491 = vadd.f32 %v1490, %v1455
    %v1492 = vrot.slane %v1491, 4
    %v1493 = vadd.f32 %v1491, %v1492
    %v1494 = vrot.slane %v1493, 2
    %v1495 = vadd.f32 %v1493, %v1494
    %v1496 = vrot.slane %v1495, 1
    %v1497 = vadd.f32 %v1495, %v1496
    %v1498 = vsel %vm195, %v864, %v1476
    %v1499 = vsel %vm195, %v885, %v1497
    %v1500 = vld [vmem:[%s5] sm:$0x3]
    %v1502 = vlaneseq
    %v1503 = vshrl.u32 %v1502, 7
    %v1504 = vsub.s32 0, %v1503
    %v1505 = vrot.slane %v1500, %v1504
    %v1506 = vlaneseq
    %v1507 = vshrl.u32 %v1506, 7
    %v1508 = vsub.s32 1, %v1507
    %v1509 = vrot.slane %v1500, %v1508
    %v1512 = vadd.f32 %v1498, %v1505
    %v1513 = vadd.f32 %v1499, %v1509
    %v1514 = vmax.f32 %v1512, 0.0
    %v1515 = vmax.f32 %v1513, 0.0
    %v1516 = vpack.c.bf16 %v1514, %v1514
    %v1517 = vpack.c.bf16 %v1515, %v1515
    %v1518 = vld [vmem:[%s6] sm:$0xf]
    %v1519 = vld [vmem:[%s6 + $0x4] sm:$0xf]
    %v1520 = vld [vmem:[%s6 + $0x8] sm:$0xf]
    %v1521 = vld [vmem:[%s6 + $0xc] sm:$0xf]
    %v1522 = vld [vmem:[%s6 + $0x10] sm:$0xf]
    %v1523 = vld [vmem:[%s6 + $0x14] sm:$0xf]
    %v1524 = vld [vmem:[%s6 + $0x18] sm:$0xf]
    %v1525 = vld [vmem:[%s6 + $0x1c] sm:$0xf]
    %v1526 = vld [vmem:[%s6 + $0x20] sm:$0xf]
    %v1527 = vld [vmem:[%s6 + $0x24] sm:$0xf]
    %v1528 = vld [vmem:[%s6 + $0x28] sm:$0xf]
    %v1529 = vld [vmem:[%s6 + $0x2c] sm:$0xf]
    %v1530 = vld [vmem:[%s6 + $0x30] sm:$0xf]
    %v1531 = vld [vmem:[%s6 + $0x34] sm:$0xf]
    %v1532 = vld [vmem:[%s6 + $0x38] sm:$0xf]
    %v1533 = vld [vmem:[%s6 + $0x3c] sm:$0xf]
    %v1534 = vld [vmem:[%s6 + $0x40] sm:$0xf]
    %v1535 = vld [vmem:[%s6 + $0x44] sm:$0xf]
    %v1536 = vld [vmem:[%s6 + $0x48] sm:$0xf]
    %v1537 = vld [vmem:[%s6 + $0x4c] sm:$0xf]
    %v1538 = vld [vmem:[%s6 + $0x50] sm:$0xf]
    %v1539 = vld [vmem:[%s6 + $0x54] sm:$0xf]
    %v1540 = vld [vmem:[%s6 + $0x58] sm:$0xf]
    %v1541 = vld [vmem:[%s6 + $0x5c] sm:$0xf]
    %v1542 = vld [vmem:[%s6 + $0x60] sm:$0xf]
    %v1543 = vld [vmem:[%s6 + $0x64] sm:$0xf]
    %v1544 = vld [vmem:[%s6 + $0x68] sm:$0xf]
    %v1545 = vld [vmem:[%s6 + $0x6c] sm:$0xf]
    %v1546 = vld [vmem:[%s6 + $0x70] sm:$0xf]
    %v1547 = vld [vmem:[%s6 + $0x74] sm:$0xf]
    %v1548 = vld [vmem:[%s6 + $0x78] sm:$0xf]
    %v1549 = vld [vmem:[%s6 + $0x7c] sm:$0xf]
    %v1550 = vld [vmem:[%s7] sm:$0x1]
    %v1552 = vlaneseq
    %v1553 = vshrl.u32 %v1552, 7
    %v1554 = vsub.s32 0, %v1553
    %v1555 = vrot.slane %v1550, %v1554
    %v1589 = vunpack.c.l.b16 %v1518
    %v1590 = vunpack.c.l.b16 %v1519
    %v1591 = vunpack.c.l.b16 %v1520
    %v1592 = vunpack.c.l.b16 %v1521
    %v1593 = vunpack.c.l.b16 %v1522
    %v1594 = vunpack.c.l.b16 %v1523
    %v1595 = vunpack.c.l.b16 %v1524
    %v1596 = vunpack.c.l.b16 %v1525
    %v1597 = vunpack.c.l.b16 %v1526
    %v1598 = vunpack.c.l.b16 %v1527
    %v1599 = vunpack.c.l.b16 %v1528
    %v1600 = vunpack.c.l.b16 %v1529
    %v1601 = vunpack.c.l.b16 %v1530
    %v1602 = vunpack.c.l.b16 %v1531
    %v1603 = vunpack.c.l.b16 %v1532
    %v1604 = vunpack.c.l.b16 %v1533
    %v1605 = vunpack.c.l.b16 %v1534
    %v1606 = vunpack.c.l.b16 %v1535
    %v1607 = vunpack.c.l.b16 %v1536
    %v1608 = vunpack.c.l.b16 %v1537
    %v1609 = vunpack.c.l.b16 %v1538
    %v1610 = vunpack.c.l.b16 %v1539
    %v1611 = vunpack.c.l.b16 %v1540
    %v1612 = vunpack.c.l.b16 %v1541
    %v1613 = vunpack.c.l.b16 %v1542
    %v1614 = vunpack.c.l.b16 %v1543
    %v1615 = vunpack.c.l.b16 %v1544
    %v1616 = vunpack.c.l.b16 %v1545
    %v1617 = vunpack.c.l.b16 %v1546
    %v1618 = vunpack.c.l.b16 %v1547
    %v1619 = vunpack.c.l.b16 %v1548
    %v1620 = vunpack.c.l.b16 %v1549
    %v1621 = vpack.c.b16 %v1590, %v1589
    %v1622 = vpack.c.b16 %v1592, %v1591
    %v1623 = vpack.c.b16 %v1594, %v1593
    %v1624 = vpack.c.b16 %v1596, %v1595
    %v1625 = vpack.c.b16 %v1598, %v1597
    %v1626 = vpack.c.b16 %v1600, %v1599
    %v1627 = vpack.c.b16 %v1602, %v1601
    %v1628 = vpack.c.b16 %v1604, %v1603
    %v1629 = vpack.c.b16 %v1606, %v1605
    %v1630 = vpack.c.b16 %v1608, %v1607
    %v1631 = vpack.c.b16 %v1610, %v1609
    %v1632 = vpack.c.b16 %v1612, %v1611
    %v1633 = vpack.c.b16 %v1614, %v1613
    %v1634 = vpack.c.b16 %v1616, %v1615
    %v1635 = vpack.c.b16 %v1618, %v1617
    %v1636 = vpack.c.b16 %v1620, %v1619
    %1653 = vmatprep.subr.bf16.mxu0 0
    %1654 = vmatpush1.bf16.msra.mxu0 %v1628
    %1655 = vmatprep.subr.bf16.mxu0 0
    %1656 = vmatpush1.bf16.msra.mxu0 %v1627
    %1657 = vmatprep.subr.bf16.mxu0 0
    %1658 = vmatpush1.bf16.msra.mxu0 %v1626
    %1659 = vmatprep.subr.bf16.mxu0 0
    %1660 = vmatpush1.bf16.msra.mxu0 %v1625
    %1661 = vmatprep.subr.bf16.mxu0 0
    %1662 = vmatpush1.bf16.msra.mxu0 %v1624
    %1663 = vmatprep.subr.bf16.mxu0 0
    %1664 = vmatpush1.bf16.msra.mxu0 %v1623
    %1665 = vmatprep.subr.bf16.mxu0 0
    %1666 = vmatpush1.bf16.msra.mxu0 %v1622
    %1667 = vmatprep.subr.bf16.mxu0 0
    %1668 = vmatpush1.bf16.msra.mxu0 %v1621
    %1669 = vmatprep.subr.bf16.mxu0 0
    %1670 = vmatpush2.bf16.msra.mxu0 %v1636
    %1671 = vmatprep.subr.bf16.mxu0 0
    %1672 = vmatpush2.bf16.msra.mxu0 %v1635
    %1673 = vmatprep.subr.bf16.mxu0 0
    %1674 = vmatpush2.bf16.msra.mxu0 %v1634
    %1675 = vmatprep.subr.bf16.mxu0 0
    %1676 = vmatpush2.bf16.msra.mxu0 %v1633
    %1677 = vmatprep.subr.bf16.mxu0 0
    %1678 = vmatpush2.bf16.msra.mxu0 %v1632
    %1679 = vmatprep.subr.bf16.mxu0 0
    %1680 = vmatpush2.bf16.msra.mxu0 %v1631
    %1681 = vmatprep.subr.bf16.mxu0 0
    %1682 = vmatpush2.bf16.msra.mxu0 %v1630
    %1683 = vmatprep.subr.bf16.mxu0 0
    %1684 = vmatpush2.bf16.msra.mxu0 %v1629
    %1685 = vmatprep.mubr.bf16.mxu0 %v1517
    %1686 = vmatmul.mubr.bf16.gmra.mxu0 %v1516
    %v1687 = vpop.f32.mrf.mxu0
    %v1688 = vadd.f32 %v1555, %v1687
    %v1689 = vpop.f32.mrf.mxu0
    %v1690 = vpop.f32.mrf.mxu0
    %v1691 = vpop.f32.mrf.mxu0
    %1692 = vdwg.mxu0
    %v1693 = vmax.f32 %v1688, 0.0
    %v1694 = vmul.f32 %v1693, %v1693
    %v1695 = vsel %vm207, %v1694, 0.0
    %1696 = vadd.xlane.f32.xlu0 %v1695
    %v1697 = vpop.xlane.xlu0 %1696
    %v1698 = vmax.f32 %v1697, 1e-24
    %v1699 = vrsqrt.pop %v1698
    %v1700 = vmul.f32 %v1693, %v1699
    %1701 = vst [vmem:[#allocation2] sm:$0x3] %v1700
    // Predicated region
    $region34: #{extract_features.1} parent=1 // pred_check
      _
    $region35: #{extract_features.1} parent=1 // pred_check_branch
      %1703 = sbr.rel (0) target = $region37
    $region36: #{extract_features.1} parent=1 // pred_region
      %s1705 = ssub.s32 32, 32
      %1706 = vsyncadd [#allocation3], %s1705
      %s1708 = sshll.u32 [#allocation2], 4
      %s1709 = int_to_ptr.vmem [resolvable:$true] %s1708
      %1711 = dma.vmem_to_hbm [thread:$0]  %s1709, 32, %s8, [#allocation3]
    $region37: #{extract_features.1} parent=1 // pred_fallthru
      _
    // Predicated region
    $region38: #{extract_features.1} parent=1 // pred_check
      _
    $region39: #{extract_features.1} parent=1 // pred_check_branch
      %1713 = sbr.rel (0) target = $region41
    $region40: #{extract_features.1} parent=1 // pred_region
      %1714 = dma.done [#allocation3], 32
    $region41: #{extract_features.1} parent=1 // pred_fallthru
      _
    %1715 = vsyncpa [#allocation3], 1

</llo_original>
